<compile_context>
chip_gen: v7x
topology: tpu7x:2x2x1
jax: 0.10.0
libtpu: 0.0.40
codegen_flags: <defaults>
</compile_context>

<pallas_src>
import jax
import jax.numpy as jnp
from jax.experimental import pallas as pl
from jax.experimental.pallas import tpu as pltpu

# ----------------------------------------------------------------------------
# Model hyper-parameters (small, consistent with the module's __init__)
# ----------------------------------------------------------------------------
INPUT_SIZE = 64
BTL_SIZE = 16
STEP = 8
BATCH = 8
EPS = 1e-5

# Layer widths: encoder 64->56->48->40->32->24->16, decoder mirrors back.
_enc = [INPUT_SIZE - STEP * k for k in range(6)] + [BTL_SIZE]      # 64..24,16
_dec = [BTL_SIZE] + [INPUT_SIZE - STEP * k for k in range(5, -1, -1)]
LAYER_DIMS = list(zip(_enc[:-1], _enc[1:])) + list(zip(_dec[:-1], _dec[1:]))
# ReLU + BatchNorm follow every linear except the last of encoder / decoder.
HAS_BN = [True] * 5 + [False] + [True] * 5 + [False]
NUM_LAYERS = len(LAYER_DIMS)          # 12
D_PAD = 128                           # padded feature width: one full lane row


# ----------------------------------------------------------------------------
# Pallas kernel: whole forward pass in one VMEM-resident block
# ----------------------------------------------------------------------------
def autoencoder_kernel(x_ref, w_ref, p_ref, o_ref):
    B = x_ref.shape[0]
    inv_b = 1.0 / float(B)
    h = x_ref[...]                                           # (B, D) f32
    for l in range(NUM_LAYERS):
        w = w_ref[l]                                         # (D, D) bf16
        p = p_ref[l]                                         # (3, D) f32
        b = p[0:1, :]                                        # (1, D)
        # bf16 operands on the MXU, f32 accumulation.
        h = jnp.dot(h.astype(jnp.bfloat16), w,
                    preferred_element_type=jnp.float32) + b
        if HAS_BN[l]:
            h = jnp.maximum(h, 0.0)                          # ReLU
            g = p[1:2, :]
            beta = p[2:3, :]
            # One pass over h: two independent sublane reductions.
            s = jnp.sum(h, axis=0, keepdims=True)
            ss = jnp.sum(h * h, axis=0, keepdims=True)
            mean = s * inv_b
            var = ss * inv_b - mean * mean
            scale = jax.lax.rsqrt(var + EPS) * g             # EUP rsqrt
            shift = beta - mean * scale
            h = h * scale + shift                            # fused affine
    o_ref[...] = h.astype(o_ref.dtype)


@jax.jit
def autoencoder_forward(x, w_stack, p_stack):
    B = x.shape[0]
    # Pad the batch input out to the lane-dense padded width.
    xp = jnp.pad(x, ((0, 0), (0, D_PAD - x.shape[1])))

    full = lambda shape: pl.BlockSpec(shape, lambda i: (0,) * len(shape))
    n_bn = sum(HAS_BN)
    cost = pl.CostEstimate(
        flops=2 * B * D_PAD * D_PAD * NUM_LAYERS,
        transcendentals=n_bn * D_PAD,                        # rsqrt per lane
        bytes_accessed=(NUM_LAYERS * D_PAD * D_PAD * 2       # bf16 weights
                        + NUM_LAYERS * 3 * D_PAD * 4         # b/gamma/beta
                        + 2 * B * D_PAD * 4),                # x + out
    )

    y = pl.pallas_call(
        autoencoder_kernel,
        out_shape=jax.ShapeDtypeStruct((B, D_PAD), jnp.float32),
        grid=(1,),
        in_specs=[
            full((B, D_PAD)),
            full((NUM_LAYERS, D_PAD, D_PAD)),
            full((NUM_LAYERS, 3, D_PAD)),
        ],
        out_specs=full((B, D_PAD)),
        compiler_params=pltpu.CompilerParams(
            dimension_semantics=("arbitrary",)),
        cost_estimate=cost,
    )(xp, w_stack, p_stack)
    return y[:, :INPUT_SIZE]


# ----------------------------------------------------------------------------
# Deterministic parameter construction (padded + stacked)
# ----------------------------------------------------------------------------
def make_params(key):
    w_stack = jnp.zeros((NUM_LAYERS, D_PAD, D_PAD), jnp.float32)
    p_stack = jnp.zeros((NUM_LAYERS, 3, D_PAD), jnp.float32)  # [b, gamma, beta]
    for l, (din, dout) in enumerate(LAYER_DIMS):
        key, kw, kb = jax.random.split(key, 3)
        w = jax.random.normal(kw, (din, dout), jnp.float32) * 0.1
        b = jax.random.normal(kb, (dout,), jnp.float32) * 0.01
        w_stack = w_stack.at[l, :din, :dout].set(w)
        p_stack = p_stack.at[l, 0, :dout].set(b)
        if HAS_BN[l]:
            p_stack = p_stack.at[l, 1, :dout].set(1.0)   # gamma (PyTorch default)
            # beta stays 0 (PyTorch default) -> padded lanes stay exactly 0
    return w_stack.astype(jnp.bfloat16), p_stack


# ----------------------------------------------------------------------------
# Pure-JAX reference (unpadded math, same bf16 matmul operands) for checking
# ----------------------------------------------------------------------------
def reference_forward(x, w_stack, p_stack):
    h = x
    for l, (din, dout) in enumerate(LAYER_DIMS):
        w = w_stack[l, :din, :dout].astype(jnp.float32)
        b = p_stack[l, 0, :dout]
        h16 = h[:, :din].astype(jnp.bfloat16).astype(jnp.float32)
        h = h16 @ w + b
        if HAS_BN[l]:
            h = jnp.maximum(h, 0.0)
            mean = jnp.mean(h, axis=0, keepdims=True)
            var = jnp.mean((h - mean) ** 2, axis=0, keepdims=True)
            h = (h - mean) / jnp.sqrt(var + EPS)
            h = h * p_stack[l, 1, :dout] + p_stack[l, 2, :dout]
    return h


if __name__ == "__main__":
    key = jax.random.PRNGKey(0)
    key, kx, kp = jax.random.split(key, 3)
    x = jax.random.normal(kx, (BATCH, INPUT_SIZE), jnp.float32)
    w_stack, p_stack = make_params(kp)

    y = autoencoder_forward(x, w_stack, p_stack)
    y = jax.block_until_ready(y)

    y_ref = reference_forward(x, w_stack, p_stack)
    assert y.shape == (BATCH, INPUT_SIZE)
    assert jnp.allclose(y, y_ref, atol=1e-3, rtol=1e-3), (
        float(jnp.max(jnp.abs(y - y_ref))))

    print("KERNEL_OK")
</pallas_src>

<mosaic_0001>
module attributes {stable_mosaic.version = 11 : i64} {
  func.func @autoencoder_kernel(%arg0: i32, %arg1: memref<8x128xf32, #tpu.memory_space<vmem>>, %arg2: memref<12x128x128xbf16, #tpu.memory_space<vmem>>, %arg3: memref<12x3x128xf32, #tpu.memory_space<vmem>>, %arg4: memref<8x128xf32, #tpu.memory_space<vmem>>) attributes {dimension_semantics = [#tpu.dimension_semantics<arbitrary>], iteration_bounds = array<i64: 1>, scalar_prefetch = 0 : i64, scratch_operands = 0 : i64, tpu.core_type = #tpu.core_type<tc>, window_params = [{pipeline_mode = #tpu.pipeline_mode<synchronous>, transform_indices = @transform_0, window_bounds = array<i64: 8, 128>}, {pipeline_mode = #tpu.pipeline_mode<synchronous>, transform_indices = @transform_1, window_bounds = array<i64: 12, 128, 128>}, {pipeline_mode = #tpu.pipeline_mode<synchronous>, transform_indices = @transform_2, window_bounds = array<i64: 12, 3, 128>}, {pipeline_mode = #tpu.pipeline_mode<synchronous>, transform_indices = @transform_3, window_bounds = array<i64: 8, 128>}]} {
    %c0 = arith.constant 0 : index
    %c0_0 = arith.constant 0 : index
    %0 = vector.load %arg1[%c0, %c0_0] : memref<8x128xf32, #tpu.memory_space<vmem>>, vector<8x128xf32>
    %c0_1 = arith.constant 0 : index
    %c0_2 = arith.constant 0 : index
    %c0_3 = arith.constant 0 : index
    %1 = vector.load %arg2[%c0_1, %c0_2, %c0_3] : memref<12x128x128xbf16, #tpu.memory_space<vmem>>, vector<1x128x128xbf16>
    %2 = vector.shape_cast %1 : vector<1x128x128xbf16> to vector<128x128xbf16>
    %c0_4 = arith.constant 0 : index
    %c0_5 = arith.constant 0 : index
    %c0_6 = arith.constant 0 : index
    %3 = vector.load %arg3[%c0_4, %c0_5, %c0_6] : memref<12x3x128xf32, #tpu.memory_space<vmem>>, vector<1x3x128xf32>
    %4 = vector.shape_cast %3 : vector<1x3x128xf32> to vector<3x128xf32>
    %5 = vector.extract_strided_slice %4 {offsets = [0, 0], sizes = [1, 128], strides = [1, 1]} : vector<3x128xf32> to vector<1x128xf32>
    %6 = arith.truncf %0 : vector<8x128xf32> to vector<8x128xbf16>
    %cst = arith.constant dense<0.000000e+00> : vector<8x128xf32>
    %7 = tpu.matmul %6, %2, %cst {dimension_numbers = #tpu.dot_dimension_numbers<[1], [0], [0], [1], [0, 0, 1, 1], [], []>} : vector<8x128xbf16>, vector<128x128xbf16>, vector<8x128xf32> -> vector<8x128xf32>
    %8 = vector.broadcast %5 : vector<1x128xf32> to vector<8x128xf32>
    %9 = arith.addf %7, %8 : vector<8x128xf32>
    %cst_7 = arith.constant 0.000000e+00 : f32
    %10 = vector.broadcast %cst_7 : f32 to vector<8x128xf32>
    %11 = arith.maximumf %9, %10 : vector<8x128xf32>
    %12 = vector.extract_strided_slice %4 {offsets = [1, 0], sizes = [1, 128], strides = [1, 1]} : vector<3x128xf32> to vector<1x128xf32>
    %13 = vector.extract_strided_slice %4 {offsets = [2, 0], sizes = [1, 128], strides = [1, 1]} : vector<3x128xf32> to vector<1x128xf32>
    %cst_8 = arith.constant dense<0.000000e+00> : vector<128xf32>
    %14 = vector.multi_reduction <add>, %11, %cst_8 [0] : vector<8x128xf32> to vector<128xf32>
    %15 = vector.shape_cast %14 : vector<128xf32> to vector<1x128xf32>
    %16 = arith.mulf %11, %11 : vector<8x128xf32>
    %cst_9 = arith.constant dense<0.000000e+00> : vector<128xf32>
    %17 = vector.multi_reduction <add>, %16, %cst_9 [0] : vector<8x128xf32> to vector<128xf32>
    %18 = vector.shape_cast %17 : vector<128xf32> to vector<1x128xf32>
    %cst_10 = arith.constant 1.250000e-01 : f32
    %19 = vector.broadcast %cst_10 : f32 to vector<1x128xf32>
    %20 = arith.mulf %15, %19 : vector<1x128xf32>
    %cst_11 = arith.constant 1.250000e-01 : f32
    %21 = vector.broadcast %cst_11 : f32 to vector<1x128xf32>
    %22 = arith.mulf %18, %21 : vector<1x128xf32>
    %23 = arith.mulf %20, %20 : vector<1x128xf32>
    %24 = arith.subf %22, %23 : vector<1x128xf32>
    %cst_12 = arith.constant 9.99999974E-6 : f32
    %25 = vector.broadcast %cst_12 : f32 to vector<1x128xf32>
    %26 = arith.addf %24, %25 : vector<1x128xf32>
    %27 = math.rsqrt %26 : vector<1x128xf32>
    %28 = arith.mulf %27, %12 : vector<1x128xf32>
    %29 = arith.mulf %20, %28 : vector<1x128xf32>
    %30 = arith.subf %13, %29 : vector<1x128xf32>
    %31 = vector.broadcast %28 : vector<1x128xf32> to vector<8x128xf32>
    %32 = arith.mulf %11, %31 : vector<8x128xf32>
    %33 = vector.broadcast %30 : vector<1x128xf32> to vector<8x128xf32>
    %34 = arith.addf %32, %33 : vector<8x128xf32>
    %c1 = arith.constant 1 : index
    %c0_13 = arith.constant 0 : index
    %c0_14 = arith.constant 0 : index
    %35 = vector.load %arg2[%c1, %c0_13, %c0_14] : memref<12x128x128xbf16, #tpu.memory_space<vmem>>, vector<1x128x128xbf16>
    %36 = vector.shape_cast %35 : vector<1x128x128xbf16> to vector<128x128xbf16>
    %c1_15 = arith.constant 1 : index
    %c0_16 = arith.constant 0 : index
    %c0_17 = arith.constant 0 : index
    %37 = vector.load %arg3[%c1_15, %c0_16, %c0_17] : memref<12x3x128xf32, #tpu.memory_space<vmem>>, vector<1x3x128xf32>
    %38 = vector.shape_cast %37 : vector<1x3x128xf32> to vector<3x128xf32>
    %39 = vector.extract_strided_slice %38 {offsets = [0, 0], sizes = [1, 128], strides = [1, 1]} : vector<3x128xf32> to vector<1x128xf32>
    %40 = arith.truncf %34 : vector<8x128xf32> to vector<8x128xbf16>
    %cst_18 = arith.constant dense<0.000000e+00> : vector<8x128xf32>
    %41 = tpu.matmul %40, %36, %cst_18 {dimension_numbers = #tpu.dot_dimension_numbers<[1], [0], [0], [1], [0, 0, 1, 1], [], []>} : vector<8x128xbf16>, vector<128x128xbf16>, vector<8x128xf32> -> vector<8x128xf32>
    %42 = vector.broadcast %39 : vector<1x128xf32> to vector<8x128xf32>
    %43 = arith.addf %41, %42 : vector<8x128xf32>
    %cst_19 = arith.constant 0.000000e+00 : f32
    %44 = vector.broadcast %cst_19 : f32 to vector<8x128xf32>
    %45 = arith.maximumf %43, %44 : vector<8x128xf32>
    %46 = vector.extract_strided_slice %38 {offsets = [1, 0], sizes = [1, 128], strides = [1, 1]} : vector<3x128xf32> to vector<1x128xf32>
    %47 = vector.extract_strided_slice %38 {offsets = [2, 0], sizes = [1, 128], strides = [1, 1]} : vector<3x128xf32> to vector<1x128xf32>
    %cst_20 = arith.constant dense<0.000000e+00> : vector<128xf32>
    %48 = vector.multi_reduction <add>, %45, %cst_20 [0] : vector<8x128xf32> to vector<128xf32>
    %49 = vector.shape_cast %48 : vector<128xf32> to vector<1x128xf32>
    %50 = arith.mulf %45, %45 : vector<8x128xf32>
    %cst_21 = arith.constant dense<0.000000e+00> : vector<128xf32>
    %51 = vector.multi_reduction <add>, %50, %cst_21 [0] : vector<8x128xf32> to vector<128xf32>
    %52 = vector.shape_cast %51 : vector<128xf32> to vector<1x128xf32>
    %cst_22 = arith.constant 1.250000e-01 : f32
    %53 = vector.broadcast %cst_22 : f32 to vector<1x128xf32>
    %54 = arith.mulf %49, %53 : vector<1x128xf32>
    %cst_23 = arith.constant 1.250000e-01 : f32
    %55 = vector.broadcast %cst_23 : f32 to vector<1x128xf32>
    %56 = arith.mulf %52, %55 : vector<1x128xf32>
    %57 = arith.mulf %54, %54 : vector<1x128xf32>
    %58 = arith.subf %56, %57 : vector<1x128xf32>
    %cst_24 = arith.constant 9.99999974E-6 : f32
    %59 = vector.broadcast %cst_24 : f32 to vector<1x128xf32>
    %60 = arith.addf %58, %59 : vector<1x128xf32>
    %61 = math.rsqrt %60 : vector<1x128xf32>
    %62 = arith.mulf %61, %46 : vector<1x128xf32>
    %63 = arith.mulf %54, %62 : vector<1x128xf32>
    %64 = arith.subf %47, %63 : vector<1x128xf32>
    %65 = vector.broadcast %62 : vector<1x128xf32> to vector<8x128xf32>
    %66 = arith.mulf %45, %65 : vector<8x128xf32>
    %67 = vector.broadcast %64 : vector<1x128xf32> to vector<8x128xf32>
    %68 = arith.addf %66, %67 : vector<8x128xf32>
    %c2 = arith.constant 2 : index
    %c0_25 = arith.constant 0 : index
    %c0_26 = arith.constant 0 : index
    %69 = vector.load %arg2[%c2, %c0_25, %c0_26] : memref<12x128x128xbf16, #tpu.memory_space<vmem>>, vector<1x128x128xbf16>
    %70 = vector.shape_cast %69 : vector<1x128x128xbf16> to vector<128x128xbf16>
    %c2_27 = arith.constant 2 : index
    %c0_28 = arith.constant 0 : index
    %c0_29 = arith.constant 0 : index
    %71 = vector.load %arg3[%c2_27, %c0_28, %c0_29] : memref<12x3x128xf32, #tpu.memory_space<vmem>>, vector<1x3x128xf32>
    %72 = vector.shape_cast %71 : vector<1x3x128xf32> to vector<3x128xf32>
    %73 = vector.extract_strided_slice %72 {offsets = [0, 0], sizes = [1, 128], strides = [1, 1]} : vector<3x128xf32> to vector<1x128xf32>
    %74 = arith.truncf %68 : vector<8x128xf32> to vector<8x128xbf16>
    %cst_30 = arith.constant dense<0.000000e+00> : vector<8x128xf32>
    %75 = tpu.matmul %74, %70, %cst_30 {dimension_numbers = #tpu.dot_dimension_numbers<[1], [0], [0], [1], [0, 0, 1, 1], [], []>} : vector<8x128xbf16>, vector<128x128xbf16>, vector<8x128xf32> -> vector<8x128xf32>
    %76 = vector.broadcast %73 : vector<1x128xf32> to vector<8x128xf32>
    %77 = arith.addf %75, %76 : vector<8x128xf32>
    %cst_31 = arith.constant 0.000000e+00 : f32
    %78 = vector.broadcast %cst_31 : f32 to vector<8x128xf32>
    %79 = arith.maximumf %77, %78 : vector<8x128xf32>
    %80 = vector.extract_strided_slice %72 {offsets = [1, 0], sizes = [1, 128], strides = [1, 1]} : vector<3x128xf32> to vector<1x128xf32>
    %81 = vector.extract_strided_slice %72 {offsets = [2, 0], sizes = [1, 128], strides = [1, 1]} : vector<3x128xf32> to vector<1x128xf32>
    %cst_32 = arith.constant dense<0.000000e+00> : vector<128xf32>
    %82 = vector.multi_reduction <add>, %79, %cst_32 [0] : vector<8x128xf32> to vector<128xf32>
    %83 = vector.shape_cast %82 : vector<128xf32> to vector<1x128xf32>
    %84 = arith.mulf %79, %79 : vector<8x128xf32>
    %cst_33 = arith.constant dense<0.000000e+00> : vector<128xf32>
    %85 = vector.multi_reduction <add>, %84, %cst_33 [0] : vector<8x128xf32> to vector<128xf32>
    %86 = vector.shape_cast %85 : vector<128xf32> to vector<1x128xf32>
    %cst_34 = arith.constant 1.250000e-01 : f32
    %87 = vector.broadcast %cst_34 : f32 to vector<1x128xf32>
    %88 = arith.mulf %83, %87 : vector<1x128xf32>
    %cst_35 = arith.constant 1.250000e-01 : f32
    %89 = vector.broadcast %cst_35 : f32 to vector<1x128xf32>
    %90 = arith.mulf %86, %89 : vector<1x128xf32>
    %91 = arith.mulf %88, %88 : vector<1x128xf32>
    %92 = arith.subf %90, %91 : vector<1x128xf32>
    %cst_36 = arith.constant 9.99999974E-6 : f32
    %93 = vector.broadcast %cst_36 : f32 to vector<1x128xf32>
    %94 = arith.addf %92, %93 : vector<1x128xf32>
    %95 = math.rsqrt %94 : vector<1x128xf32>
    %96 = arith.mulf %95, %80 : vector<1x128xf32>
    %97 = arith.mulf %88, %96 : vector<1x128xf32>
    %98 = arith.subf %81, %97 : vector<1x128xf32>
    %99 = vector.broadcast %96 : vector<1x128xf32> to vector<8x128xf32>
    %100 = arith.mulf %79, %99 : vector<8x128xf32>
    %101 = vector.broadcast %98 : vector<1x128xf32> to vector<8x128xf32>
    %102 = arith.addf %100, %101 : vector<8x128xf32>
    %c3 = arith.constant 3 : index
    %c0_37 = arith.constant 0 : index
    %c0_38 = arith.constant 0 : index
    %103 = vector.load %arg2[%c3, %c0_37, %c0_38] : memref<12x128x128xbf16, #tpu.memory_space<vmem>>, vector<1x128x128xbf16>
    %104 = vector.shape_cast %103 : vector<1x128x128xbf16> to vector<128x128xbf16>
    %c3_39 = arith.constant 3 : index
    %c0_40 = arith.constant 0 : index
    %c0_41 = arith.constant 0 : index
    %105 = vector.load %arg3[%c3_39, %c0_40, %c0_41] : memref<12x3x128xf32, #tpu.memory_space<vmem>>, vector<1x3x128xf32>
    %106 = vector.shape_cast %105 : vector<1x3x128xf32> to vector<3x128xf32>
    %107 = vector.extract_strided_slice %106 {offsets = [0, 0], sizes = [1, 128], strides = [1, 1]} : vector<3x128xf32> to vector<1x128xf32>
    %108 = arith.truncf %102 : vector<8x128xf32> to vector<8x128xbf16>
    %cst_42 = arith.constant dense<0.000000e+00> : vector<8x128xf32>
    %109 = tpu.matmul %108, %104, %cst_42 {dimension_numbers = #tpu.dot_dimension_numbers<[1], [0], [0], [1], [0, 0, 1, 1], [], []>} : vector<8x128xbf16>, vector<128x128xbf16>, vector<8x128xf32> -> vector<8x128xf32>
    %110 = vector.broadcast %107 : vector<1x128xf32> to vector<8x128xf32>
    %111 = arith.addf %109, %110 : vector<8x128xf32>
    %cst_43 = arith.constant 0.000000e+00 : f32
    %112 = vector.broadcast %cst_43 : f32 to vector<8x128xf32>
    %113 = arith.maximumf %111, %112 : vector<8x128xf32>
    %114 = vector.extract_strided_slice %106 {offsets = [1, 0], sizes = [1, 128], strides = [1, 1]} : vector<3x128xf32> to vector<1x128xf32>
    %115 = vector.extract_strided_slice %106 {offsets = [2, 0], sizes = [1, 128], strides = [1, 1]} : vector<3x128xf32> to vector<1x128xf32>
    %cst_44 = arith.constant dense<0.000000e+00> : vector<128xf32>
    %116 = vector.multi_reduction <add>, %113, %cst_44 [0] : vector<8x128xf32> to vector<128xf32>
    %117 = vector.shape_cast %116 : vector<128xf32> to vector<1x128xf32>
    %118 = arith.mulf %113, %113 : vector<8x128xf32>
    %cst_45 = arith.constant dense<0.000000e+00> : vector<128xf32>
    %119 = vector.multi_reduction <add>, %118, %cst_45 [0] : vector<8x128xf32> to vector<128xf32>
    %120 = vector.shape_cast %119 : vector<128xf32> to vector<1x128xf32>
    %cst_46 = arith.constant 1.250000e-01 : f32
    %121 = vector.broadcast %cst_46 : f32 to vector<1x128xf32>
    %122 = arith.mulf %117, %121 : vector<1x128xf32>
    %cst_47 = arith.constant 1.250000e-01 : f32
    %123 = vector.broadcast %cst_47 : f32 to vector<1x128xf32>
    %124 = arith.mulf %120, %123 : vector<1x128xf32>
    %125 = arith.mulf %122, %122 : vector<1x128xf32>
    %126 = arith.subf %124, %125 : vector<1x128xf32>
    %cst_48 = arith.constant 9.99999974E-6 : f32
    %127 = vector.broadcast %cst_48 : f32 to vector<1x128xf32>
    %128 = arith.addf %126, %127 : vector<1x128xf32>
    %129 = math.rsqrt %128 : vector<1x128xf32>
    %130 = arith.mulf %129, %114 : vector<1x128xf32>
    %131 = arith.mulf %122, %130 : vector<1x128xf32>
    %132 = arith.subf %115, %131 : vector<1x128xf32>
    %133 = vector.broadcast %130 : vector<1x128xf32> to vector<8x128xf32>
    %134 = arith.mulf %113, %133 : vector<8x128xf32>
    %135 = vector.broadcast %132 : vector<1x128xf32> to vector<8x128xf32>
    %136 = arith.addf %134, %135 : vector<8x128xf32>
    %c4 = arith.constant 4 : index
    %c0_49 = arith.constant 0 : index
    %c0_50 = arith.constant 0 : index
    %137 = vector.load %arg2[%c4, %c0_49, %c0_50] : memref<12x128x128xbf16, #tpu.memory_space<vmem>>, vector<1x128x128xbf16>
    %138 = vector.shape_cast %137 : vector<1x128x128xbf16> to vector<128x128xbf16>
    %c4_51 = arith.constant 4 : index
    %c0_52 = arith.constant 0 : index
    %c0_53 = arith.constant 0 : index
    %139 = vector.load %arg3[%c4_51, %c0_52, %c0_53] : memref<12x3x128xf32, #tpu.memory_space<vmem>>, vector<1x3x128xf32>
    %140 = vector.shape_cast %139 : vector<1x3x128xf32> to vector<3x128xf32>
    %141 = vector.extract_strided_slice %140 {offsets = [0, 0], sizes = [1, 128], strides = [1, 1]} : vector<3x128xf32> to vector<1x128xf32>
    %142 = arith.truncf %136 : vector<8x128xf32> to vector<8x128xbf16>
    %cst_54 = arith.constant dense<0.000000e+00> : vector<8x128xf32>
    %143 = tpu.matmul %142, %138, %cst_54 {dimension_numbers = #tpu.dot_dimension_numbers<[1], [0], [0], [1], [0, 0, 1, 1], [], []>} : vector<8x128xbf16>, vector<128x128xbf16>, vector<8x128xf32> -> vector<8x128xf32>
    %144 = vector.broadcast %141 : vector<1x128xf32> to vector<8x128xf32>
    %145 = arith.addf %143, %144 : vector<8x128xf32>
    %cst_55 = arith.constant 0.000000e+00 : f32
    %146 = vector.broadcast %cst_55 : f32 to vector<8x128xf32>
    %147 = arith.maximumf %145, %146 : vector<8x128xf32>
    %148 = vector.extract_strided_slice %140 {offsets = [1, 0], sizes = [1, 128], strides = [1, 1]} : vector<3x128xf32> to vector<1x128xf32>
    %149 = vector.extract_strided_slice %140 {offsets = [2, 0], sizes = [1, 128], strides = [1, 1]} : vector<3x128xf32> to vector<1x128xf32>
    %cst_56 = arith.constant dense<0.000000e+00> : vector<128xf32>
    %150 = vector.multi_reduction <add>, %147, %cst_56 [0] : vector<8x128xf32> to vector<128xf32>
    %151 = vector.shape_cast %150 : vector<128xf32> to vector<1x128xf32>
    %152 = arith.mulf %147, %147 : vector<8x128xf32>
    %cst_57 = arith.constant dense<0.000000e+00> : vector<128xf32>
    %153 = vector.multi_reduction <add>, %152, %cst_57 [0] : vector<8x128xf32> to vector<128xf32>
    %154 = vector.shape_cast %153 : vector<128xf32> to vector<1x128xf32>
    %cst_58 = arith.constant 1.250000e-01 : f32
    %155 = vector.broadcast %cst_58 : f32 to vector<1x128xf32>
    %156 = arith.mulf %151, %155 : vector<1x128xf32>
    %cst_59 = arith.constant 1.250000e-01 : f32
    %157 = vector.broadcast %cst_59 : f32 to vector<1x128xf32>
    %158 = arith.mulf %154, %157 : vector<1x128xf32>
    %159 = arith.mulf %156, %156 : vector<1x128xf32>
    %160 = arith.subf %158, %159 : vector<1x128xf32>
    %cst_60 = arith.constant 9.99999974E-6 : f32
    %161 = vector.broadcast %cst_60 : f32 to vector<1x128xf32>
    %162 = arith.addf %160, %161 : vector<1x128xf32>
    %163 = math.rsqrt %162 : vector<1x128xf32>
    %164 = arith.mulf %163, %148 : vector<1x128xf32>
    %165 = arith.mulf %156, %164 : vector<1x128xf32>
    %166 = arith.subf %149, %165 : vector<1x128xf32>
    %167 = vector.broadcast %164 : vector<1x128xf32> to vector<8x128xf32>
    %168 = arith.mulf %147, %167 : vector<8x128xf32>
    %169 = vector.broadcast %166 : vector<1x128xf32> to vector<8x128xf32>
    %170 = arith.addf %168, %169 : vector<8x128xf32>
    %c5 = arith.constant 5 : index
    %c0_61 = arith.constant 0 : index
    %c0_62 = arith.constant 0 : index
    %171 = vector.load %arg2[%c5, %c0_61, %c0_62] : memref<12x128x128xbf16, #tpu.memory_space<vmem>>, vector<1x128x128xbf16>
    %172 = vector.shape_cast %171 : vector<1x128x128xbf16> to vector<128x128xbf16>
    %c5_63 = arith.constant 5 : index
    %c0_64 = arith.constant 0 : index
    %c0_65 = arith.constant 0 : index
    %173 = vector.load %arg3[%c5_63, %c0_64, %c0_65] : memref<12x3x128xf32, #tpu.memory_space<vmem>>, vector<1x3x128xf32>
    %174 = vector.shape_cast %173 : vector<1x3x128xf32> to vector<3x128xf32>
    %175 = vector.extract_strided_slice %174 {offsets = [0, 0], sizes = [1, 128], strides = [1, 1]} : vector<3x128xf32> to vector<1x128xf32>
    %176 = arith.truncf %170 : vector<8x128xf32> to vector<8x128xbf16>
    %cst_66 = arith.constant dense<0.000000e+00> : vector<8x128xf32>
    %177 = tpu.matmul %176, %172, %cst_66 {dimension_numbers = #tpu.dot_dimension_numbers<[1], [0], [0], [1], [0, 0, 1, 1], [], []>} : vector<8x128xbf16>, vector<128x128xbf16>, vector<8x128xf32> -> vector<8x128xf32>
    %178 = vector.broadcast %175 : vector<1x128xf32> to vector<8x128xf32>
    %179 = arith.addf %177, %178 : vector<8x128xf32>
    %c6 = arith.constant 6 : index
    %c0_67 = arith.constant 0 : index
    %c0_68 = arith.constant 0 : index
    %180 = vector.load %arg2[%c6, %c0_67, %c0_68] : memref<12x128x128xbf16, #tpu.memory_space<vmem>>, vector<1x128x128xbf16>
    %181 = vector.shape_cast %180 : vector<1x128x128xbf16> to vector<128x128xbf16>
    %c6_69 = arith.constant 6 : index
    %c0_70 = arith.constant 0 : index
    %c0_71 = arith.constant 0 : index
    %182 = vector.load %arg3[%c6_69, %c0_70, %c0_71] : memref<12x3x128xf32, #tpu.memory_space<vmem>>, vector<1x3x128xf32>
    %183 = vector.shape_cast %182 : vector<1x3x128xf32> to vector<3x128xf32>
    %184 = vector.extract_strided_slice %183 {offsets = [0, 0], sizes = [1, 128], strides = [1, 1]} : vector<3x128xf32> to vector<1x128xf32>
    %185 = arith.truncf %179 : vector<8x128xf32> to vector<8x128xbf16>
    %cst_72 = arith.constant dense<0.000000e+00> : vector<8x128xf32>
    %186 = tpu.matmul %185, %181, %cst_72 {dimension_numbers = #tpu.dot_dimension_numbers<[1], [0], [0], [1], [0, 0, 1, 1], [], []>} : vector<8x128xbf16>, vector<128x128xbf16>, vector<8x128xf32> -> vector<8x128xf32>
    %187 = vector.broadcast %184 : vector<1x128xf32> to vector<8x128xf32>
    %188 = arith.addf %186, %187 : vector<8x128xf32>
    %cst_73 = arith.constant 0.000000e+00 : f32
    %189 = vector.broadcast %cst_73 : f32 to vector<8x128xf32>
    %190 = arith.maximumf %188, %189 : vector<8x128xf32>
    %191 = vector.extract_strided_slice %183 {offsets = [1, 0], sizes = [1, 128], strides = [1, 1]} : vector<3x128xf32> to vector<1x128xf32>
    %192 = vector.extract_strided_slice %183 {offsets = [2, 0], sizes = [1, 128], strides = [1, 1]} : vector<3x128xf32> to vector<1x128xf32>
    %cst_74 = arith.constant dense<0.000000e+00> : vector<128xf32>
    %193 = vector.multi_reduction <add>, %190, %cst_74 [0] : vector<8x128xf32> to vector<128xf32>
    %194 = vector.shape_cast %193 : vector<128xf32> to vector<1x128xf32>
    %195 = arith.mulf %190, %190 : vector<8x128xf32>
    %cst_75 = arith.constant dense<0.000000e+00> : vector<128xf32>
    %196 = vector.multi_reduction <add>, %195, %cst_75 [0] : vector<8x128xf32> to vector<128xf32>
    %197 = vector.shape_cast %196 : vector<128xf32> to vector<1x128xf32>
    %cst_76 = arith.constant 1.250000e-01 : f32
    %198 = vector.broadcast %cst_76 : f32 to vector<1x128xf32>
    %199 = arith.mulf %194, %198 : vector<1x128xf32>
    %cst_77 = arith.constant 1.250000e-01 : f32
    %200 = vector.broadcast %cst_77 : f32 to vector<1x128xf32>
    %201 = arith.mulf %197, %200 : vector<1x128xf32>
    %202 = arith.mulf %199, %199 : vector<1x128xf32>
    %203 = arith.subf %201, %202 : vector<1x128xf32>
    %cst_78 = arith.constant 9.99999974E-6 : f32
    %204 = vector.broadcast %cst_78 : f32 to vector<1x128xf32>
    %205 = arith.addf %203, %204 : vector<1x128xf32>
    %206 = math.rsqrt %205 : vector<1x128xf32>
    %207 = arith.mulf %206, %191 : vector<1x128xf32>
    %208 = arith.mulf %199, %207 : vector<1x128xf32>
    %209 = arith.subf %192, %208 : vector<1x128xf32>
    %210 = vector.broadcast %207 : vector<1x128xf32> to vector<8x128xf32>
    %211 = arith.mulf %190, %210 : vector<8x128xf32>
    %212 = vector.broadcast %209 : vector<1x128xf32> to vector<8x128xf32>
    %213 = arith.addf %211, %212 : vector<8x128xf32>
    %c7 = arith.constant 7 : index
    %c0_79 = arith.constant 0 : index
    %c0_80 = arith.constant 0 : index
    %214 = vector.load %arg2[%c7, %c0_79, %c0_80] : memref<12x128x128xbf16, #tpu.memory_space<vmem>>, vector<1x128x128xbf16>
    %215 = vector.shape_cast %214 : vector<1x128x128xbf16> to vector<128x128xbf16>
    %c7_81 = arith.constant 7 : index
    %c0_82 = arith.constant 0 : index
    %c0_83 = arith.constant 0 : index
    %216 = vector.load %arg3[%c7_81, %c0_82, %c0_83] : memref<12x3x128xf32, #tpu.memory_space<vmem>>, vector<1x3x128xf32>
    %217 = vector.shape_cast %216 : vector<1x3x128xf32> to vector<3x128xf32>
    %218 = vector.extract_strided_slice %217 {offsets = [0, 0], sizes = [1, 128], strides = [1, 1]} : vector<3x128xf32> to vector<1x128xf32>
    %219 = arith.truncf %213 : vector<8x128xf32> to vector<8x128xbf16>
    %cst_84 = arith.constant dense<0.000000e+00> : vector<8x128xf32>
    %220 = tpu.matmul %219, %215, %cst_84 {dimension_numbers = #tpu.dot_dimension_numbers<[1], [0], [0], [1], [0, 0, 1, 1], [], []>} : vector<8x128xbf16>, vector<128x128xbf16>, vector<8x128xf32> -> vector<8x128xf32>
    %221 = vector.broadcast %218 : vector<1x128xf32> to vector<8x128xf32>
    %222 = arith.addf %220, %221 : vector<8x128xf32>
    %cst_85 = arith.constant 0.000000e+00 : f32
    %223 = vector.broadcast %cst_85 : f32 to vector<8x128xf32>
    %224 = arith.maximumf %222, %223 : vector<8x128xf32>
    %225 = vector.extract_strided_slice %217 {offsets = [1, 0], sizes = [1, 128], strides = [1, 1]} : vector<3x128xf32> to vector<1x128xf32>
    %226 = vector.extract_strided_slice %217 {offsets = [2, 0], sizes = [1, 128], strides = [1, 1]} : vector<3x128xf32> to vector<1x128xf32>
    %cst_86 = arith.constant dense<0.000000e+00> : vector<128xf32>
    %227 = vector.multi_reduction <add>, %224, %cst_86 [0] : vector<8x128xf32> to vector<128xf32>
    %228 = vector.shape_cast %227 : vector<128xf32> to vector<1x128xf32>
    %229 = arith.mulf %224, %224 : vector<8x128xf32>
    %cst_87 = arith.constant dense<0.000000e+00> : vector<128xf32>
    %230 = vector.multi_reduction <add>, %229, %cst_87 [0] : vector<8x128xf32> to vector<128xf32>
    %231 = vector.shape_cast %230 : vector<128xf32> to vector<1x128xf32>
    %cst_88 = arith.constant 1.250000e-01 : f32
    %232 = vector.broadcast %cst_88 : f32 to vector<1x128xf32>
    %233 = arith.mulf %228, %232 : vector<1x128xf32>
    %cst_89 = arith.constant 1.250000e-01 : f32
    %234 = vector.broadcast %cst_89 : f32 to vector<1x128xf32>
    %235 = arith.mulf %231, %234 : vector<1x128xf32>
    %236 = arith.mulf %233, %233 : vector<1x128xf32>
    %237 = arith.subf %235, %236 : vector<1x128xf32>
    %cst_90 = arith.constant 9.99999974E-6 : f32
    %238 = vector.broadcast %cst_90 : f32 to vector<1x128xf32>
    %239 = arith.addf %237, %238 : vector<1x128xf32>
    %240 = math.rsqrt %239 : vector<1x128xf32>
    %241 = arith.mulf %240, %225 : vector<1x128xf32>
    %242 = arith.mulf %233, %241 : vector<1x128xf32>
    %243 = arith.subf %226, %242 : vector<1x128xf32>
    %244 = vector.broadcast %241 : vector<1x128xf32> to vector<8x128xf32>
    %245 = arith.mulf %224, %244 : vector<8x128xf32>
    %246 = vector.broadcast %243 : vector<1x128xf32> to vector<8x128xf32>
    %247 = arith.addf %245, %246 : vector<8x128xf32>
    %c8 = arith.constant 8 : index
    %c0_91 = arith.constant 0 : index
    %c0_92 = arith.constant 0 : index
    %248 = vector.load %arg2[%c8, %c0_91, %c0_92] : memref<12x128x128xbf16, #tpu.memory_space<vmem>>, vector<1x128x128xbf16>
    %249 = vector.shape_cast %248 : vector<1x128x128xbf16> to vector<128x128xbf16>
    %c8_93 = arith.constant 8 : index
    %c0_94 = arith.constant 0 : index
    %c0_95 = arith.constant 0 : index
    %250 = vector.load %arg3[%c8_93, %c0_94, %c0_95] : memref<12x3x128xf32, #tpu.memory_space<vmem>>, vector<1x3x128xf32>
    %251 = vector.shape_cast %250 : vector<1x3x128xf32> to vector<3x128xf32>
    %252 = vector.extract_strided_slice %251 {offsets = [0, 0], sizes = [1, 128], strides = [1, 1]} : vector<3x128xf32> to vector<1x128xf32>
    %253 = arith.truncf %247 : vector<8x128xf32> to vector<8x128xbf16>
    %cst_96 = arith.constant dense<0.000000e+00> : vector<8x128xf32>
    %254 = tpu.matmul %253, %249, %cst_96 {dimension_numbers = #tpu.dot_dimension_numbers<[1], [0], [0], [1], [0, 0, 1, 1], [], []>} : vector<8x128xbf16>, vector<128x128xbf16>, vector<8x128xf32> -> vector<8x128xf32>
    %255 = vector.broadcast %252 : vector<1x128xf32> to vector<8x128xf32>
    %256 = arith.addf %254, %255 : vector<8x128xf32>
    %cst_97 = arith.constant 0.000000e+00 : f32
    %257 = vector.broadcast %cst_97 : f32 to vector<8x128xf32>
    %258 = arith.maximumf %256, %257 : vector<8x128xf32>
    %259 = vector.extract_strided_slice %251 {offsets = [1, 0], sizes = [1, 128], strides = [1, 1]} : vector<3x128xf32> to vector<1x128xf32>
    %260 = vector.extract_strided_slice %251 {offsets = [2, 0], sizes = [1, 128], strides = [1, 1]} : vector<3x128xf32> to vector<1x128xf32>
    %cst_98 = arith.constant dense<0.000000e+00> : vector<128xf32>
    %261 = vector.multi_reduction <add>, %258, %cst_98 [0] : vector<8x128xf32> to vector<128xf32>
    %262 = vector.shape_cast %261 : vector<128xf32> to vector<1x128xf32>
    %263 = arith.mulf %258, %258 : vector<8x128xf32>
    %cst_99 = arith.constant dense<0.000000e+00> : vector<128xf32>
    %264 = vector.multi_reduction <add>, %263, %cst_99 [0] : vector<8x128xf32> to vector<128xf32>
    %265 = vector.shape_cast %264 : vector<128xf32> to vector<1x128xf32>
    %cst_100 = arith.constant 1.250000e-01 : f32
    %266 = vector.broadcast %cst_100 : f32 to vector<1x128xf32>
    %267 = arith.mulf %262, %266 : vector<1x128xf32>
    %cst_101 = arith.constant 1.250000e-01 : f32
    %268 = vector.broadcast %cst_101 : f32 to vector<1x128xf32>
    %269 = arith.mulf %265, %268 : vector<1x128xf32>
    %270 = arith.mulf %267, %267 : vector<1x128xf32>
    %271 = arith.subf %269, %270 : vector<1x128xf32>
    %cst_102 = arith.constant 9.99999974E-6 : f32
    %272 = vector.broadcast %cst_102 : f32 to vector<1x128xf32>
    %273 = arith.addf %271, %272 : vector<1x128xf32>
    %274 = math.rsqrt %273 : vector<1x128xf32>
    %275 = arith.mulf %274, %259 : vector<1x128xf32>
    %276 = arith.mulf %267, %275 : vector<1x128xf32>
    %277 = arith.subf %260, %276 : vector<1x128xf32>
    %278 = vector.broadcast %275 : vector<1x128xf32> to vector<8x128xf32>
    %279 = arith.mulf %258, %278 : vector<8x128xf32>
    %280 = vector.broadcast %277 : vector<1x128xf32> to vector<8x128xf32>
    %281 = arith.addf %279, %280 : vector<8x128xf32>
    %c9 = arith.constant 9 : index
    %c0_103 = arith.constant 0 : index
    %c0_104 = arith.constant 0 : index
    %282 = vector.load %arg2[%c9, %c0_103, %c0_104] : memref<12x128x128xbf16, #tpu.memory_space<vmem>>, vector<1x128x128xbf16>
    %283 = vector.shape_cast %282 : vector<1x128x128xbf16> to vector<128x128xbf16>
    %c9_105 = arith.constant 9 : index
    %c0_106 = arith.constant 0 : index
    %c0_107 = arith.constant 0 : index
    %284 = vector.load %arg3[%c9_105, %c0_106, %c0_107] : memref<12x3x128xf32, #tpu.memory_space<vmem>>, vector<1x3x128xf32>
    %285 = vector.shape_cast %284 : vector<1x3x128xf32> to vector<3x128xf32>
    %286 = vector.extract_strided_slice %285 {offsets = [0, 0], sizes = [1, 128], strides = [1, 1]} : vector<3x128xf32> to vector<1x128xf32>
    %287 = arith.truncf %281 : vector<8x128xf32> to vector<8x128xbf16>
    %cst_108 = arith.constant dense<0.000000e+00> : vector<8x128xf32>
    %288 = tpu.matmul %287, %283, %cst_108 {dimension_numbers = #tpu.dot_dimension_numbers<[1], [0], [0], [1], [0, 0, 1, 1], [], []>} : vector<8x128xbf16>, vector<128x128xbf16>, vector<8x128xf32> -> vector<8x128xf32>
    %289 = vector.broadcast %286 : vector<1x128xf32> to vector<8x128xf32>
    %290 = arith.addf %288, %289 : vector<8x128xf32>
    %cst_109 = arith.constant 0.000000e+00 : f32
    %291 = vector.broadcast %cst_109 : f32 to vector<8x128xf32>
    %292 = arith.maximumf %290, %291 : vector<8x128xf32>
    %293 = vector.extract_strided_slice %285 {offsets = [1, 0], sizes = [1, 128], strides = [1, 1]} : vector<3x128xf32> to vector<1x128xf32>
    %294 = vector.extract_strided_slice %285 {offsets = [2, 0], sizes = [1, 128], strides = [1, 1]} : vector<3x128xf32> to vector<1x128xf32>
    %cst_110 = arith.constant dense<0.000000e+00> : vector<128xf32>
    %295 = vector.multi_reduction <add>, %292, %cst_110 [0] : vector<8x128xf32> to vector<128xf32>
    %296 = vector.shape_cast %295 : vector<128xf32> to vector<1x128xf32>
    %297 = arith.mulf %292, %292 : vector<8x128xf32>
    %cst_111 = arith.constant dense<0.000000e+00> : vector<128xf32>
    %298 = vector.multi_reduction <add>, %297, %cst_111 [0] : vector<8x128xf32> to vector<128xf32>
    %299 = vector.shape_cast %298 : vector<128xf32> to vector<1x128xf32>
    %cst_112 = arith.constant 1.250000e-01 : f32
    %300 = vector.broadcast %cst_112 : f32 to vector<1x128xf32>
    %301 = arith.mulf %296, %300 : vector<1x128xf32>
    %cst_113 = arith.constant 1.250000e-01 : f32
    %302 = vector.broadcast %cst_113 : f32 to vector<1x128xf32>
    %303 = arith.mulf %299, %302 : vector<1x128xf32>
    %304 = arith.mulf %301, %301 : vector<1x128xf32>
    %305 = arith.subf %303, %304 : vector<1x128xf32>
    %cst_114 = arith.constant 9.99999974E-6 : f32
    %306 = vector.broadcast %cst_114 : f32 to vector<1x128xf32>
    %307 = arith.addf %305, %306 : vector<1x128xf32>
    %308 = math.rsqrt %307 : vector<1x128xf32>
    %309 = arith.mulf %308, %293 : vector<1x128xf32>
    %310 = arith.mulf %301, %309 : vector<1x128xf32>
    %311 = arith.subf %294, %310 : vector<1x128xf32>
    %312 = vector.broadcast %309 : vector<1x128xf32> to vector<8x128xf32>
    %313 = arith.mulf %292, %312 : vector<8x128xf32>
    %314 = vector.broadcast %311 : vector<1x128xf32> to vector<8x128xf32>
    %315 = arith.addf %313, %314 : vector<8x128xf32>
    %c10 = arith.constant 10 : index
    %c0_115 = arith.constant 0 : index
    %c0_116 = arith.constant 0 : index
    %316 = vector.load %arg2[%c10, %c0_115, %c0_116] : memref<12x128x128xbf16, #tpu.memory_space<vmem>>, vector<1x128x128xbf16>
    %317 = vector.shape_cast %316 : vector<1x128x128xbf16> to vector<128x128xbf16>
    %c10_117 = arith.constant 10 : index
    %c0_118 = arith.constant 0 : index
    %c0_119 = arith.constant 0 : index
    %318 = vector.load %arg3[%c10_117, %c0_118, %c0_119] : memref<12x3x128xf32, #tpu.memory_space<vmem>>, vector<1x3x128xf32>
    %319 = vector.shape_cast %318 : vector<1x3x128xf32> to vector<3x128xf32>
    %320 = vector.extract_strided_slice %319 {offsets = [0, 0], sizes = [1, 128], strides = [1, 1]} : vector<3x128xf32> to vector<1x128xf32>
    %321 = arith.truncf %315 : vector<8x128xf32> to vector<8x128xbf16>
    %cst_120 = arith.constant dense<0.000000e+00> : vector<8x128xf32>
    %322 = tpu.matmul %321, %317, %cst_120 {dimension_numbers = #tpu.dot_dimension_numbers<[1], [0], [0], [1], [0, 0, 1, 1], [], []>} : vector<8x128xbf16>, vector<128x128xbf16>, vector<8x128xf32> -> vector<8x128xf32>
    %323 = vector.broadcast %320 : vector<1x128xf32> to vector<8x128xf32>
    %324 = arith.addf %322, %323 : vector<8x128xf32>
    %cst_121 = arith.constant 0.000000e+00 : f32
    %325 = vector.broadcast %cst_121 : f32 to vector<8x128xf32>
    %326 = arith.maximumf %324, %325 : vector<8x128xf32>
    %327 = vector.extract_strided_slice %319 {offsets = [1, 0], sizes = [1, 128], strides = [1, 1]} : vector<3x128xf32> to vector<1x128xf32>
    %328 = vector.extract_strided_slice %319 {offsets = [2, 0], sizes = [1, 128], strides = [1, 1]} : vector<3x128xf32> to vector<1x128xf32>
    %cst_122 = arith.constant dense<0.000000e+00> : vector<128xf32>
    %329 = vector.multi_reduction <add>, %326, %cst_122 [0] : vector<8x128xf32> to vector<128xf32>
    %330 = vector.shape_cast %329 : vector<128xf32> to vector<1x128xf32>
    %331 = arith.mulf %326, %326 : vector<8x128xf32>
    %cst_123 = arith.constant dense<0.000000e+00> : vector<128xf32>
    %332 = vector.multi_reduction <add>, %331, %cst_123 [0] : vector<8x128xf32> to vector<128xf32>
    %333 = vector.shape_cast %332 : vector<128xf32> to vector<1x128xf32>
    %cst_124 = arith.constant 1.250000e-01 : f32
    %334 = vector.broadcast %cst_124 : f32 to vector<1x128xf32>
    %335 = arith.mulf %330, %334 : vector<1x128xf32>
    %cst_125 = arith.constant 1.250000e-01 : f32
    %336 = vector.broadcast %cst_125 : f32 to vector<1x128xf32>
    %337 = arith.mulf %333, %336 : vector<1x128xf32>
    %338 = arith.mulf %335, %335 : vector<1x128xf32>
    %339 = arith.subf %337, %338 : vector<1x128xf32>
    %cst_126 = arith.constant 9.99999974E-6 : f32
    %340 = vector.broadcast %cst_126 : f32 to vector<1x128xf32>
    %341 = arith.addf %339, %340 : vector<1x128xf32>
    %342 = math.rsqrt %341 : vector<1x128xf32>
    %343 = arith.mulf %342, %327 : vector<1x128xf32>
    %344 = arith.mulf %335, %343 : vector<1x128xf32>
    %345 = arith.subf %328, %344 : vector<1x128xf32>
    %346 = vector.broadcast %343 : vector<1x128xf32> to vector<8x128xf32>
    %347 = arith.mulf %326, %346 : vector<8x128xf32>
    %348 = vector.broadcast %345 : vector<1x128xf32> to vector<8x128xf32>
    %349 = arith.addf %347, %348 : vector<8x128xf32>
    %c11 = arith.constant 11 : index
    %c0_127 = arith.constant 0 : index
    %c0_128 = arith.constant 0 : index
    %350 = vector.load %arg2[%c11, %c0_127, %c0_128] : memref<12x128x128xbf16, #tpu.memory_space<vmem>>, vector<1x128x128xbf16>
    %351 = vector.shape_cast %350 : vector<1x128x128xbf16> to vector<128x128xbf16>
    %c11_129 = arith.constant 11 : index
    %c0_130 = arith.constant 0 : index
    %c0_131 = arith.constant 0 : index
    %352 = vector.load %arg3[%c11_129, %c0_130, %c0_131] : memref<12x3x128xf32, #tpu.memory_space<vmem>>, vector<1x3x128xf32>
    %353 = vector.shape_cast %352 : vector<1x3x128xf32> to vector<3x128xf32>
    %354 = vector.extract_strided_slice %353 {offsets = [0, 0], sizes = [1, 128], strides = [1, 1]} : vector<3x128xf32> to vector<1x128xf32>
    %355 = arith.truncf %349 : vector<8x128xf32> to vector<8x128xbf16>
    %cst_132 = arith.constant dense<0.000000e+00> : vector<8x128xf32>
    %356 = tpu.matmul %355, %351, %cst_132 {dimension_numbers = #tpu.dot_dimension_numbers<[1], [0], [0], [1], [0, 0, 1, 1], [], []>} : vector<8x128xbf16>, vector<128x128xbf16>, vector<8x128xf32> -> vector<8x128xf32>
    %357 = vector.broadcast %354 : vector<1x128xf32> to vector<8x128xf32>
    %358 = arith.addf %356, %357 : vector<8x128xf32>
    %c0_133 = arith.constant 0 : index
    %c0_134 = arith.constant 0 : index
    %359 = vector.load %arg4[%c0_133, %c0_134] : memref<8x128xf32, #tpu.memory_space<vmem>>, vector<8x128xf32>
    tpu.vector_store %arg4[%c0_133, %c0_134], %358 {strides = array<i32>} : memref<8x128xf32, #tpu.memory_space<vmem>>, vector<8x128xf32>,
    return
  }
  func.func @transform_0(%arg0: i32) -> (i32, i32) {
    %c0_i32 = arith.constant 0 : i32
    %c0_i32_0 = arith.constant 0 : i32
    %c0_i32_1 = arith.constant 0 : i32
    return %c0_i32, %c0_i32_0 : i32, i32
  }
  func.func @transform_1(%arg0: i32) -> (i32, i32, i32) {
    %c0_i32 = arith.constant 0 : i32
    %c0_i32_0 = arith.constant 0 : i32
    %c0_i32_1 = arith.constant 0 : i32
    %c0_i32_2 = arith.constant 0 : i32
    return %c0_i32, %c0_i32_0, %c0_i32_1 : i32, i32, i32
  }
  func.func @transform_2(%arg0: i32) -> (i32, i32, i32) {
    %c0_i32 = arith.constant 0 : i32
    %c0_i32_0 = arith.constant 0 : i32
    %c0_i32_1 = arith.constant 0 : i32
    %c0_i32_2 = arith.constant 0 : i32
    return %c0_i32, %c0_i32_0, %c0_i32_1 : i32, i32, i32
  }
  func.func @transform_3(%arg0: i32) -> (i32, i32) {
    %c0_i32 = arith.constant 0 : i32
    %c0_i32_0 = arith.constant 0 : i32
    %c0_i32_1 = arith.constant 0 : i32
    return %c0_i32, %c0_i32_0 : i32, i32
  }
}

</mosaic_0001>

<llo_original>
// kernel: autoencoder_forward.1
$region0: #{autoencoder_forward.1}
  #allocation0 [shape = 'u32[]', space=smem, size = 0x4, offset = 0x4, fixed_abs, tag = 'smem constant byte address 0x4 - core index']
  #allocation1 [shape = 'u32[144,128]{1,0:T(1,128)}', space=vmem, size = 0x12000, scoped, tag = 'internal scratch']
  %s0 = inlined_call_operand.vmem [shape: f32[8,128], index: 0, kind: input, shape index: {}]
  %s1 = inlined_call_operand.hbm [shape: bf16[12,128,128], index: 1, kind: input, shape index: {}]
  %s2 = inlined_call_operand.hbm [shape: f32[12,3,128], index: 2, kind: input, shape index: {}]
  %s3 = inlined_call_operand.hbm [shape: f32[8,128], index: 3, kind: output, shape index: {}]
  %s4 = sld [smem:[#allocation0]]
  $region30: #{autoencoder_forward.1} parent=0
    _
  %s6 = ssub.s32 1, %s4
  %s7 = scalar_select 0, %s6, %s4
  $region1: #{autoencoder_forward.1} parent=0
    #allocation2 [shape = 'u8[393216]{0}', space=vmem, size = 0x60000, scoped, tag = 'input window, operand 1, single buffered']
    #allocation3 [shape = 's32[1]{0}', space=sflag, size = 0x4, scoped, tag = 'scoped memory for autoencoder_forward.1']
    #allocation4 [shape = 's32[1]{0}', space=sflag, size = 0x4, scoped, tag = 'scoped memory for autoencoder_forward.1']
    #allocation5 [shape = 'u8[24576]{0}', space=vmem, size = 0x6000, scoped, tag = 'input window, operand 2, single buffered']
    #allocation6 [shape = 's32[1]{0}', space=sflag, size = 0x4, scoped, tag = 'scoped memory for autoencoder_forward.1']
    #allocation7 [shape = 'u8[4096]{0}', space=vmem, size = 0x1000, scoped, tag = 'output window, operand 0, single buffered']
    %8 = vsyncpa [#allocation3], 0
    %9 = vsyncpa [#allocation6], 0
    %10 = vsyncpa [#allocation4], 0
    // Predicated region
    $region2: #{autoencoder_forward.1} parent=1 // pred_check
      _
    $region3: #{autoencoder_forward.1} parent=1 // pred_check_branch
      %12 = sbr.rel (0) target = $region5
    $region4: #{autoencoder_forward.1} parent=1 // pred_region
      _
    $region5: #{autoencoder_forward.1} parent=1 // pred_fallthru
      _
    // Predicated region
    $region6: #{autoencoder_forward.1} parent=1 // pred_check
      _
    $region7: #{autoencoder_forward.1} parent=1 // pred_check_branch
      %14 = sbr.rel (0) target = $region9
    $region8: #{autoencoder_forward.1} parent=1 // pred_region
      %s16 = ssub.s32 12288, 12288
      %17 = vsyncadd [#allocation3], %s16
      %s18 = sshll.u32 [#allocation2], 4
      %s19 = int_to_ptr.vmem [resolvable:$true] %s18
      %24 = dma.hbm_to_vmem [thread:$0]  %s1, 12288, %s19, [#allocation3], 64, 64, 4
    $region9: #{autoencoder_forward.1} parent=1 // pred_fallthru
      _
    // Predicated region
    $region10: #{autoencoder_forward.1} parent=1 // pred_check
      _
    $region11: #{autoencoder_forward.1} parent=1 // pred_check_branch
      %26 = sbr.rel (0) target = $region13
    $region12: #{autoencoder_forward.1} parent=1 // pred_region
      %s28 = ssub.s32 768, 768
      %29 = vsyncadd [#allocation6], %s28
      %s30 = sshll.u32 [#allocation5], 4
      %s31 = int_to_ptr.vmem [resolvable:$true] %s30
      %36 = dma.hbm_to_vmem [thread:$0]  %s2, 768, %s31, [#allocation6], 64, 64, 4
    $region13: #{autoencoder_forward.1} parent=1 // pred_fallthru
      _
    // Predicated region
    $region14: #{autoencoder_forward.1} parent=1 // pred_check
      _
    $region15: #{autoencoder_forward.1} parent=1 // pred_check_branch
      %38 = sbr.rel (0) target = $region17
    $region16: #{autoencoder_forward.1} parent=1 // pred_region
      %39 = dma.done [#allocation3], 12288
    $region17: #{autoencoder_forward.1} parent=1 // pred_fallthru
      _
    // Predicated region
    $region18: #{autoencoder_forward.1} parent=1 // pred_check
      _
    $region19: #{autoencoder_forward.1} parent=1 // pred_check_branch
      %41 = sbr.rel (0) target = $region21
    $region20: #{autoencoder_forward.1} parent=1 // pred_region
      %42 = dma.done [#allocation6], 768
    $region21: #{autoencoder_forward.1} parent=1 // pred_fallthru
      _
    %v44 = vld [vmem:[%s0] sm:$0xff]
    %v45 = vld [vmem:[#allocation2] sm:$0xf]
    %v46 = vld [vmem:[#allocation2 + $0x4] sm:$0xf]
    %v47 = vld [vmem:[#allocation2 + $0x8] sm:$0xf]
    %v48 = vld [vmem:[#allocation2 + $0xc] sm:$0xf]
    %v49 = vld [vmem:[#allocation2 + $0x10] sm:$0xf]
    %v50 = vld [vmem:[#allocation2 + $0x14] sm:$0xf]
    %v51 = vld [vmem:[#allocation2 + $0x18] sm:$0xf]
    %v52 = vld [vmem:[#allocation2 + $0x1c] sm:$0xf]
    %v53 = vld [vmem:[#allocation2 + $0x20] sm:$0xf]
    %v54 = vld [vmem:[#allocation2 + $0x24] sm:$0xf]
    %v55 = vld [vmem:[#allocation2 + $0x28] sm:$0xf]
    %v56 = vld [vmem:[#allocation2 + $0x2c] sm:$0xf]
    %v57 = vld [vmem:[#allocation2 + $0x30] sm:$0xf]
    %v58 = vld [vmem:[#allocation2 + $0x34] sm:$0xf]
    %v59 = vld [vmem:[#allocation2 + $0x38] sm:$0xf]
    %v60 = vld [vmem:[#allocation2 + $0x3c] sm:$0xf]
    %v61 = vld [vmem:[#allocation5] sm:$0x7]
    %v62 = vpack.c.bf16 %v44, %v44
    %v63 = vlaneseq
    %v64 = vshrl.u32 %v63, 7
    %v65 = vsub.s32 0, %v64
    %v66 = vrot.slane %v61, %v65
    %v83 = vunpack.c.l.b16 %v45
    %v84 = vunpack.c.l.b16 %v46
    %v85 = vunpack.c.l.b16 %v47
    %v86 = vunpack.c.l.b16 %v48
    %v87 = vunpack.c.l.b16 %v49
    %v88 = vunpack.c.l.b16 %v50
    %v89 = vunpack.c.l.b16 %v51
    %v90 = vunpack.c.l.b16 %v52
    %v91 = vunpack.c.l.b16 %v53
    %v92 = vunpack.c.l.b16 %v54
    %v93 = vunpack.c.l.b16 %v55
    %v94 = vunpack.c.l.b16 %v56
    %v95 = vunpack.c.l.b16 %v57
    %v96 = vunpack.c.l.b16 %v58
    %v97 = vunpack.c.l.b16 %v59
    %v98 = vunpack.c.l.b16 %v60
    %v99 = vpack.c.b16 %v84, %v83
    %v100 = vpack.c.b16 %v86, %v85
    %v101 = vpack.c.b16 %v88, %v87
    %v102 = vpack.c.b16 %v90, %v89
    %v103 = vpack.c.b16 %v92, %v91
    %v104 = vpack.c.b16 %v94, %v93
    %v105 = vpack.c.b16 %v96, %v95
    %v106 = vpack.c.b16 %v98, %v97
    %115 = vmatprep.subr.bf16.mxu0 0
    %116 = vmatpush1.bf16.msra.mxu0 %v99
    %117 = vmatprep.subr.bf16.mxu0 0
    %118 = vmatpush1.bf16.msra.mxu0 %v100
    %119 = vmatprep.subr.bf16.mxu0 0
    %120 = vmatpush1.bf16.msra.mxu0 %v101
    %121 = vmatprep.subr.bf16.mxu0 0
    %122 = vmatpush1.bf16.msra.mxu0 %v102
    %123 = vmatprep.subr.bf16.mxu0 0
    %124 = vmatpush1.bf16.msra.mxu0 %v103
    %125 = vmatprep.subr.bf16.mxu0 0
    %126 = vmatpush1.bf16.msra.mxu0 %v104
    %127 = vmatprep.subr.bf16.mxu0 0
    %128 = vmatpush1.bf16.msra.mxu0 %v105
    %129 = vmatprep.subr.bf16.mxu0 0
    %130 = vmatpush1.bf16.msra.mxu0 %v106
    %131 = vmatprep.subr.bf16.mxu0 0
    %132 = vmatpush1.bf16.msra.mxu0 0
    %133 = vmatprep.subr.bf16.mxu0 0
    %134 = vmatpush1.bf16.msra.mxu0 0
    %135 = vmatprep.subr.bf16.mxu0 0
    %136 = vmatpush1.bf16.msra.mxu0 0
    %137 = vmatprep.subr.bf16.mxu0 0
    %138 = vmatpush1.bf16.msra.mxu0 0
    %139 = vmatprep.subr.bf16.mxu0 0
    %140 = vmatpush1.bf16.msra.mxu0 0
    %141 = vmatprep.subr.bf16.mxu0 0
    %142 = vmatpush1.bf16.msra.mxu0 0
    %143 = vmatprep.subr.bf16.mxu0 0
    %144 = vmatpush1.bf16.msra.mxu0 0
    %145 = vmatprep.subr.bf16.mxu0 0
    %146 = vmatpush1.bf16.msra.mxu0 0
    %147 = vmatprep.mubr.bf16.mxu0 0
    %148 = vmatmul.mubr.bf16.gmra.mrb[0].mxu0 %v62
    %v149 = vpop.f32.mrb[0].mxu0
    %v150 = vadd.f32 %v66, %v149
    %v151 = vpop.f32.mrb[0].mxu0
    %v152 = vpop.f32.mrb[0].mxu0
    %v153 = vpop.f32.mrb[0].mxu0
    %154 = vdwg.mxu0
    %v155 = vmax.f32 %v150, 0.0
    %v156 = vrot.slane %v155, 4
    %v157 = vadd.f32 %v155, %v156
    %v158 = vrot.slane %v157, 2
    %v159 = vadd.f32 %v157, %v158
    %v160 = vrot.slane %v159, 1
    %v161 = vadd.f32 %v159, %v160
    %v162 = vmul.f32 %v155, %v155
    %v163 = vrot.slane %v162, 4
    %v164 = vadd.f32 %v162, %v163
    %v165 = vrot.slane %v164, 2
    %v166 = vadd.f32 %v164, %v165
    %v167 = vrot.slane %v166, 1
    %v168 = vadd.f32 %v166, %v167
    %v169 = vmul.f32 %v161, 0.125
    %v170 = vmul.f32 %v168, 0.125
    %v171 = vmul.f32 %v169, %v169
    %v172 = vsub.f32 %v170, %v171
    %v173 = vadd.f32 %v172, 1e-05
    %v174 = vrsqrt.pop %v173
    %v175 = vmul.f32 %v174, %v61
    %v176 = vmul.f32 %v169, %v175
    %v178 = vrot.slane %v176, 7
    %v180 = vsub.f32 %v61, %v178
    %v181 = vlaneseq
    %v182 = vshrl.u32 %v181, 7
    %v183 = vsub.s32 1, %v182
    %v184 = vrot.slane %v175, %v183
    %v185 = vmul.f32 %v155, %v184
    %v186 = vlaneseq
    %v187 = vshrl.u32 %v186, 7
    %v188 = vsub.s32 2, %v187
    %v189 = vrot.slane %v180, %v188
    %v190 = vadd.f32 %v185, %v189
    %s191 = scalar_lea.vmem [#allocation2], 64
    %v192 = vld [vmem:[%s191] sm:$0xf]
    %v193 = vld [vmem:[%s191 + $0x4] sm:$0xf]
    %v194 = vld [vmem:[%s191 + $0x8] sm:$0xf]
    %v195 = vld [vmem:[%s191 + $0xc] sm:$0xf]
    %v196 = vld [vmem:[%s191 + $0x10] sm:$0xf]
    %v197 = vld [vmem:[%s191 + $0x14] sm:$0xf]
    %v198 = vld [vmem:[%s191 + $0x18] sm:$0xf]
    %v199 = vld [vmem:[%s191 + $0x1c] sm:$0xf]
    %v200 = vld [vmem:[%s191 + $0x20] sm:$0xf]
    %v201 = vld [vmem:[%s191 + $0x24] sm:$0xf]
    %v202 = vld [vmem:[%s191 + $0x28] sm:$0xf]
    %v203 = vld [vmem:[%s191 + $0x2c] sm:$0xf]
    %v204 = vld [vmem:[%s191 + $0x30] sm:$0xf]
    %v205 = vld [vmem:[%s191 + $0x34] sm:$0xf]
    %v206 = vld [vmem:[%s191 + $0x38] sm:$0xf]
    %v207 = vld [vmem:[%s191 + $0x3c] sm:$0xf]
    %s208 = scalar_lea.vmem [#allocation5], 4
    %v209 = vld [vmem:[%s208] sm:$0x7]
    %v210 = vpack.c.bf16 %v190, %v190
    %v211 = vlaneseq
    %v212 = vshrl.u32 %v211, 7
    %v213 = vsub.s32 0, %v212
    %v214 = vrot.slane %v209, %v213
    %v231 = vunpack.c.l.b16 %v192
    %v232 = vunpack.c.l.b16 %v193
    %v233 = vunpack.c.l.b16 %v194
    %v234 = vunpack.c.l.b16 %v195
    %v235 = vunpack.c.l.b16 %v196
    %v236 = vunpack.c.l.b16 %v197
    %v237 = vunpack.c.l.b16 %v198
    %v238 = vunpack.c.l.b16 %v199
    %v239 = vunpack.c.l.b16 %v200
    %v240 = vunpack.c.l.b16 %v201
    %v241 = vunpack.c.l.b16 %v202
    %v242 = vunpack.c.l.b16 %v203
    %v243 = vunpack.c.l.b16 %v204
    %v244 = vunpack.c.l.b16 %v205
    %v245 = vunpack.c.l.b16 %v206
    %v246 = vunpack.c.l.b16 %v207
    %v247 = vpack.c.b16 %v232, %v231
    %v248 = vpack.c.b16 %v234, %v233
    %v249 = vpack.c.b16 %v236, %v235
    %v250 = vpack.c.b16 %v238, %v237
    %v251 = vpack.c.b16 %v240, %v239
    %v252 = vpack.c.b16 %v242, %v241
    %v253 = vpack.c.b16 %v244, %v243
    %v254 = vpack.c.b16 %v246, %v245
    %263 = vmatprep.subr.bf16.mxu0 0
    %264 = vmatpush1.bf16.msra.mxu0 %v247
    %265 = vmatprep.subr.bf16.mxu0 0
    %266 = vmatpush1.bf16.msra.mxu0 %v248
    %267 = vmatprep.subr.bf16.mxu0 0
    %268 = vmatpush1.bf16.msra.mxu0 %v249
    %269 = vmatprep.subr.bf16.mxu0 0
    %270 = vmatpush1.bf16.msra.mxu0 %v250
    %271 = vmatprep.subr.bf16.mxu0 0
    %272 = vmatpush1.bf16.msra.mxu0 %v251
    %273 = vmatprep.subr.bf16.mxu0 0
    %274 = vmatpush1.bf16.msra.mxu0 %v252
    %275 = vmatprep.subr.bf16.mxu0 0
    %276 = vmatpush1.bf16.msra.mxu0 %v253
    %277 = vmatprep.subr.bf16.mxu0 0
    %278 = vmatpush1.bf16.msra.mxu0 %v254
    %279 = vmatprep.subr.bf16.mxu0 0
    %280 = vmatpush1.bf16.msra.mxu0 0
    %281 = vmatprep.subr.bf16.mxu0 0
    %282 = vmatpush1.bf16.msra.mxu0 0
    %283 = vmatprep.subr.bf16.mxu0 0
    %284 = vmatpush1.bf16.msra.mxu0 0
    %285 = vmatprep.subr.bf16.mxu0 0
    %286 = vmatpush1.bf16.msra.mxu0 0
    %287 = vmatprep.subr.bf16.mxu0 0
    %288 = vmatpush1.bf16.msra.mxu0 0
    %289 = vmatprep.subr.bf16.mxu0 0
    %290 = vmatpush1.bf16.msra.mxu0 0
    %291 = vmatprep.subr.bf16.mxu0 0
    %292 = vmatpush1.bf16.msra.mxu0 0
    %293 = vmatprep.subr.bf16.mxu0 0
    %294 = vmatpush1.bf16.msra.mxu0 0
    %295 = vmatprep.mubr.bf16.mxu0 0
    %296 = vmatmul.mubr.bf16.gmra.mrb[0].mxu0 %v210
    %v297 = vpop.f32.mrb[0].mxu0
    %v298 = vadd.f32 %v214, %v297
    %v299 = vpop.f32.mrb[0].mxu0
    %v300 = vpop.f32.mrb[0].mxu0
    %v301 = vpop.f32.mrb[0].mxu0
    %302 = vdwg.mxu0
    %v303 = vmax.f32 %v298, 0.0
    %v304 = vrot.slane %v303, 4
    %v305 = vadd.f32 %v303, %v304
    %v306 = vrot.slane %v305, 2
    %v307 = vadd.f32 %v305, %v306
    %v308 = vrot.slane %v307, 1
    %v309 = vadd.f32 %v307, %v308
    %v310 = vmul.f32 %v303, %v303
    %v311 = vrot.slane %v310, 4
    %v312 = vadd.f32 %v310, %v311
    %v313 = vrot.slane %v312, 2
    %v314 = vadd.f32 %v312, %v313
    %v315 = vrot.slane %v314, 1
    %v316 = vadd.f32 %v314, %v315
    %v317 = vmul.f32 %v309, 0.125
    %v318 = vmul.f32 %v316, 0.125
    %v319 = vmul.f32 %v317, %v317
    %v320 = vsub.f32 %v318, %v319
    %v321 = vadd.f32 %v320, 1e-05
    %v322 = vrsqrt.pop %v321
    %v323 = vmul.f32 %v322, %v209
    %v324 = vmul.f32 %v317, %v323
    %v326 = vrot.slane %v324, 7
    %v328 = vsub.f32 %v209, %v326
    %v329 = vlaneseq
    %v330 = vshrl.u32 %v329, 7
    %v331 = vsub.s32 1, %v330
    %v332 = vrot.slane %v323, %v331
    %v333 = vmul.f32 %v303, %v332
    %v334 = vlaneseq
    %v335 = vshrl.u32 %v334, 7
    %v336 = vsub.s32 2, %v335
    %v337 = vrot.slane %v328, %v336
    %v338 = vadd.f32 %v333, %v337
    %s339 = scalar_lea.vmem [#allocation2], 128
    %v340 = vld [vmem:[%s339] sm:$0xf]
    %v341 = vld [vmem:[%s339 + $0x4] sm:$0xf]
    %v342 = vld [vmem:[%s339 + $0x8] sm:$0xf]
    %v343 = vld [vmem:[%s339 + $0xc] sm:$0xf]
    %v344 = vld [vmem:[%s339 + $0x10] sm:$0xf]
    %v345 = vld [vmem:[%s339 + $0x14] sm:$0xf]
    %v346 = vld [vmem:[%s339 + $0x18] sm:$0xf]
    %v347 = vld [vmem:[%s339 + $0x1c] sm:$0xf]
    %v348 = vld [vmem:[%s339 + $0x20] sm:$0xf]
    %v349 = vld [vmem:[%s339 + $0x24] sm:$0xf]
    %v350 = vld [vmem:[%s339 + $0x28] sm:$0xf]
    %v351 = vld [vmem:[%s339 + $0x2c] sm:$0xf]
    %v352 = vld [vmem:[%s339 + $0x30] sm:$0xf]
    %v353 = vld [vmem:[%s339 + $0x34] sm:$0xf]
    %v354 = vld [vmem:[%s339 + $0x38] sm:$0xf]
    %v355 = vld [vmem:[%s339 + $0x3c] sm:$0xf]
    %s356 = scalar_lea.vmem [#allocation5], 8
    %v357 = vld [vmem:[%s356] sm:$0x7]
    %v358 = vpack.c.bf16 %v338, %v338
    %v359 = vlaneseq
    %v360 = vshrl.u32 %v359, 7
    %v361 = vsub.s32 0, %v360
    %v362 = vrot.slane %v357, %v361
    %v379 = vunpack.c.l.b16 %v340
    %v380 = vunpack.c.l.b16 %v341
    %v381 = vunpack.c.l.b16 %v342
    %v382 = vunpack.c.l.b16 %v343
    %v383 = vunpack.c.l.b16 %v344
    %v384 = vunpack.c.l.b16 %v345
    %v385 = vunpack.c.l.b16 %v346
    %v386 = vunpack.c.l.b16 %v347
    %v387 = vunpack.c.l.b16 %v348
    %v388 = vunpack.c.l.b16 %v349
    %v389 = vunpack.c.l.b16 %v350
    %v390 = vunpack.c.l.b16 %v351
    %v391 = vunpack.c.l.b16 %v352
    %v392 = vunpack.c.l.b16 %v353
    %v393 = vunpack.c.l.b16 %v354
    %v394 = vunpack.c.l.b16 %v355
    %v395 = vpack.c.b16 %v380, %v379
    %v396 = vpack.c.b16 %v382, %v381
    %v397 = vpack.c.b16 %v384, %v383
    %v398 = vpack.c.b16 %v386, %v385
    %v399 = vpack.c.b16 %v388, %v387
    %v400 = vpack.c.b16 %v390, %v389
    %v401 = vpack.c.b16 %v392, %v391
    %v402 = vpack.c.b16 %v394, %v393
    %411 = vmatprep.subr.bf16.mxu0 0
    %412 = vmatpush1.bf16.msra.mxu0 %v395
    %413 = vmatprep.subr.bf16.mxu0 0
    %414 = vmatpush1.bf16.msra.mxu0 %v396
    %415 = vmatprep.subr.bf16.mxu0 0
    %416 = vmatpush1.bf16.msra.mxu0 %v397
    %417 = vmatprep.subr.bf16.mxu0 0
    %418 = vmatpush1.bf16.msra.mxu0 %v398
    %419 = vmatprep.subr.bf16.mxu0 0
    %420 = vmatpush1.bf16.msra.mxu0 %v399
    %421 = vmatprep.subr.bf16.mxu0 0
    %422 = vmatpush1.bf16.msra.mxu0 %v400
    %423 = vmatprep.subr.bf16.mxu0 0
    %424 = vmatpush1.bf16.msra.mxu0 %v401
    %425 = vmatprep.subr.bf16.mxu0 0
    %426 = vmatpush1.bf16.msra.mxu0 %v402
    %427 = vmatprep.subr.bf16.mxu0 0
    %428 = vmatpush1.bf16.msra.mxu0 0
    %429 = vmatprep.subr.bf16.mxu0 0
    %430 = vmatpush1.bf16.msra.mxu0 0
    %431 = vmatprep.subr.bf16.mxu0 0
    %432 = vmatpush1.bf16.msra.mxu0 0
    %433 = vmatprep.subr.bf16.mxu0 0
    %434 = vmatpush1.bf16.msra.mxu0 0
    %435 = vmatprep.subr.bf16.mxu0 0
    %436 = vmatpush1.bf16.msra.mxu0 0
    %437 = vmatprep.subr.bf16.mxu0 0
    %438 = vmatpush1.bf16.msra.mxu0 0
    %439 = vmatprep.subr.bf16.mxu0 0
    %440 = vmatpush1.bf16.msra.mxu0 0
    %441 = vmatprep.subr.bf16.mxu0 0
    %442 = vmatpush1.bf16.msra.mxu0 0
    %443 = vmatprep.mubr.bf16.mxu0 0
    %444 = vmatmul.mubr.bf16.gmra.mrb[0].mxu0 %v358
    %v445 = vpop.f32.mrb[0].mxu0
    %v446 = vadd.f32 %v362, %v445
    %v447 = vpop.f32.mrb[0].mxu0
    %v448 = vpop.f32.mrb[0].mxu0
    %v449 = vpop.f32.mrb[0].mxu0
    %450 = vdwg.mxu0
    %v451 = vmax.f32 %v446, 0.0
    %v452 = vrot.slane %v451, 4
    %v453 = vadd.f32 %v451, %v452
    %v454 = vrot.slane %v453, 2
    %v455 = vadd.f32 %v453, %v454
    %v456 = vrot.slane %v455, 1
    %v457 = vadd.f32 %v455, %v456
    %v458 = vmul.f32 %v451, %v451
    %v459 = vrot.slane %v458, 4
    %v460 = vadd.f32 %v458, %v459
    %v461 = vrot.slane %v460, 2
    %v462 = vadd.f32 %v460, %v461
    %v463 = vrot.slane %v462, 1
    %v464 = vadd.f32 %v462, %v463
    %v465 = vmul.f32 %v457, 0.125
    %v466 = vmul.f32 %v464, 0.125
    %v467 = vmul.f32 %v465, %v465
    %v468 = vsub.f32 %v466, %v467
    %v469 = vadd.f32 %v468, 1e-05
    %v470 = vrsqrt.pop %v469
    %v471 = vmul.f32 %v470, %v357
    %v472 = vmul.f32 %v465, %v471
    %v474 = vrot.slane %v472, 7
    %v476 = vsub.f32 %v357, %v474
    %v477 = vlaneseq
    %v478 = vshrl.u32 %v477, 7
    %v479 = vsub.s32 1, %v478
    %v480 = vrot.slane %v471, %v479
    %v481 = vmul.f32 %v451, %v480
    %v482 = vlaneseq
    %v483 = vshrl.u32 %v482, 7
    %v484 = vsub.s32 2, %v483
    %v485 = vrot.slane %v476, %v484
    %v486 = vadd.f32 %v481, %v485
    %s487 = scalar_lea.vmem [#allocation2], 192
    %v488 = vld [vmem:[%s487] sm:$0xf]
    %v489 = vld [vmem:[%s487 + $0x4] sm:$0xf]
    %v490 = vld [vmem:[%s487 + $0x8] sm:$0xf]
    %v491 = vld [vmem:[%s487 + $0xc] sm:$0xf]
    %v492 = vld [vmem:[%s487 + $0x10] sm:$0xf]
    %v493 = vld [vmem:[%s487 + $0x14] sm:$0xf]
    %v494 = vld [vmem:[%s487 + $0x18] sm:$0xf]
    %v495 = vld [vmem:[%s487 + $0x1c] sm:$0xf]
    %v496 = vld [vmem:[%s487 + $0x20] sm:$0xf]
    %v497 = vld [vmem:[%s487 + $0x24] sm:$0xf]
    %v498 = vld [vmem:[%s487 + $0x28] sm:$0xf]
    %v499 = vld [vmem:[%s487 + $0x2c] sm:$0xf]
    %v500 = vld [vmem:[%s487 + $0x30] sm:$0xf]
    %v501 = vld [vmem:[%s487 + $0x34] sm:$0xf]
    %v502 = vld [vmem:[%s487 + $0x38] sm:$0xf]
    %v503 = vld [vmem:[%s487 + $0x3c] sm:$0xf]
    %s504 = scalar_lea.vmem [#allocation5], 12
    %v505 = vld [vmem:[%s504] sm:$0x7]
    %v506 = vpack.c.bf16 %v486, %v486
    %v507 = vlaneseq
    %v508 = vshrl.u32 %v507, 7
    %v509 = vsub.s32 0, %v508
    %v510 = vrot.slane %v505, %v509
    %v527 = vunpack.c.l.b16 %v488
    %v528 = vunpack.c.l.b16 %v489
    %v529 = vunpack.c.l.b16 %v490
    %v530 = vunpack.c.l.b16 %v491
    %v531 = vunpack.c.l.b16 %v492
    %v532 = vunpack.c.l.b16 %v493
    %v533 = vunpack.c.l.b16 %v494
    %v534 = vunpack.c.l.b16 %v495
    %v535 = vunpack.c.l.b16 %v496
    %v536 = vunpack.c.l.b16 %v497
    %v537 = vunpack.c.l.b16 %v498
    %v538 = vunpack.c.l.b16 %v499
    %v539 = vunpack.c.l.b16 %v500
    %v540 = vunpack.c.l.b16 %v501
    %v541 = vunpack.c.l.b16 %v502
    %v542 = vunpack.c.l.b16 %v503
    %v543 = vpack.c.b16 %v528, %v527
    %v544 = vpack.c.b16 %v530, %v529
    %v545 = vpack.c.b16 %v532, %v531
    %v546 = vpack.c.b16 %v534, %v533
    %v547 = vpack.c.b16 %v536, %v535
    %v548 = vpack.c.b16 %v538, %v537
    %v549 = vpack.c.b16 %v540, %v539
    %v550 = vpack.c.b16 %v542, %v541
    %559 = vmatprep.subr.bf16.mxu0 0
    %560 = vmatpush1.bf16.msra.mxu0 %v543
    %561 = vmatprep.subr.bf16.mxu0 0
    %562 = vmatpush1.bf16.msra.mxu0 %v544
    %563 = vmatprep.subr.bf16.mxu0 0
    %564 = vmatpush1.bf16.msra.mxu0 %v545
    %565 = vmatprep.subr.bf16.mxu0 0
    %566 = vmatpush1.bf16.msra.mxu0 %v546
    %567 = vmatprep.subr.bf16.mxu0 0
    %568 = vmatpush1.bf16.msra.mxu0 %v547
    %569 = vmatprep.subr.bf16.mxu0 0
    %570 = vmatpush1.bf16.msra.mxu0 %v548
    %571 = vmatprep.subr.bf16.mxu0 0
    %572 = vmatpush1.bf16.msra.mxu0 %v549
    %573 = vmatprep.subr.bf16.mxu0 0
    %574 = vmatpush1.bf16.msra.mxu0 %v550
    %575 = vmatprep.subr.bf16.mxu0 0
    %576 = vmatpush1.bf16.msra.mxu0 0
    %577 = vmatprep.subr.bf16.mxu0 0
    %578 = vmatpush1.bf16.msra.mxu0 0
    %579 = vmatprep.subr.bf16.mxu0 0
    %580 = vmatpush1.bf16.msra.mxu0 0
    %581 = vmatprep.subr.bf16.mxu0 0
    %582 = vmatpush1.bf16.msra.mxu0 0
    %583 = vmatprep.subr.bf16.mxu0 0
    %584 = vmatpush1.bf16.msra.mxu0 0
    %585 = vmatprep.subr.bf16.mxu0 0
    %586 = vmatpush1.bf16.msra.mxu0 0
    %587 = vmatprep.subr.bf16.mxu0 0
    %588 = vmatpush1.bf16.msra.mxu0 0
    %589 = vmatprep.subr.bf16.mxu0 0
    %590 = vmatpush1.bf16.msra.mxu0 0
    %591 = vmatprep.mubr.bf16.mxu0 0
    %592 = vmatmul.mubr.bf16.gmra.mrb[0].mxu0 %v506
    %v593 = vpop.f32.mrb[0].mxu0
    %v594 = vadd.f32 %v510, %v593
    %v595 = vpop.f32.mrb[0].mxu0
    %v596 = vpop.f32.mrb[0].mxu0
    %v597 = vpop.f32.mrb[0].mxu0
    %598 = vdwg.mxu0
    %v599 = vmax.f32 %v594, 0.0
    %v600 = vrot.slane %v599, 4
    %v601 = vadd.f32 %v599, %v600
    %v602 = vrot.slane %v601, 2
    %v603 = vadd.f32 %v601, %v602
    %v604 = vrot.slane %v603, 1
    %v605 = vadd.f32 %v603, %v604
    %v606 = vmul.f32 %v599, %v599
    %v607 = vrot.slane %v606, 4
    %v608 = vadd.f32 %v606, %v607
    %v609 = vrot.slane %v608, 2
    %v610 = vadd.f32 %v608, %v609
    %v611 = vrot.slane %v610, 1
    %v612 = vadd.f32 %v610, %v611
    %v613 = vmul.f32 %v605, 0.125
    %v614 = vmul.f32 %v612, 0.125
    %v615 = vmul.f32 %v613, %v613
    %v616 = vsub.f32 %v614, %v615
    %v617 = vadd.f32 %v616, 1e-05
    %v618 = vrsqrt.pop %v617
    %v619 = vmul.f32 %v618, %v505
    %v620 = vmul.f32 %v613, %v619
    %v622 = vrot.slane %v620, 7
    %v624 = vsub.f32 %v505, %v622
    %v625 = vlaneseq
    %v626 = vshrl.u32 %v625, 7
    %v627 = vsub.s32 1, %v626
    %v628 = vrot.slane %v619, %v627
    %v629 = vmul.f32 %v599, %v628
    %v630 = vlaneseq
    %v631 = vshrl.u32 %v630, 7
    %v632 = vsub.s32 2, %v631
    %v633 = vrot.slane %v624, %v632
    %v634 = vadd.f32 %v629, %v633
    %s635 = scalar_lea.vmem [#allocation2], 256
    %v636 = vld [vmem:[%s635] sm:$0xf]
    %v637 = vld [vmem:[%s635 + $0x4] sm:$0xf]
    %v638 = vld [vmem:[%s635 + $0x8] sm:$0xf]
    %v639 = vld [vmem:[%s635 + $0xc] sm:$0xf]
    %v640 = vld [vmem:[%s635 + $0x10] sm:$0xf]
    %v641 = vld [vmem:[%s635 + $0x14] sm:$0xf]
    %v642 = vld [vmem:[%s635 + $0x18] sm:$0xf]
    %v643 = vld [vmem:[%s635 + $0x1c] sm:$0xf]
    %v644 = vld [vmem:[%s635 + $0x20] sm:$0xf]
    %v645 = vld [vmem:[%s635 + $0x24] sm:$0xf]
    %v646 = vld [vmem:[%s635 + $0x28] sm:$0xf]
    %v647 = vld [vmem:[%s635 + $0x2c] sm:$0xf]
    %v648 = vld [vmem:[%s635 + $0x30] sm:$0xf]
    %v649 = vld [vmem:[%s635 + $0x34] sm:$0xf]
    %v650 = vld [vmem:[%s635 + $0x38] sm:$0xf]
    %v651 = vld [vmem:[%s635 + $0x3c] sm:$0xf]
    %s652 = scalar_lea.vmem [#allocation5], 16
    %v653 = vld [vmem:[%s652] sm:$0x7]
    %v654 = vpack.c.bf16 %v634, %v634
    %v655 = vlaneseq
    %v656 = vshrl.u32 %v655, 7
    %v657 = vsub.s32 0, %v656
    %v658 = vrot.slane %v653, %v657
    %v675 = vunpack.c.l.b16 %v636
    %v676 = vunpack.c.l.b16 %v637
    %v677 = vunpack.c.l.b16 %v638
    %v678 = vunpack.c.l.b16 %v639
    %v679 = vunpack.c.l.b16 %v640
    %v680 = vunpack.c.l.b16 %v641
    %v681 = vunpack.c.l.b16 %v642
    %v682 = vunpack.c.l.b16 %v643
    %v683 = vunpack.c.l.b16 %v644
    %v684 = vunpack.c.l.b16 %v645
    %v685 = vunpack.c.l.b16 %v646
    %v686 = vunpack.c.l.b16 %v647
    %v687 = vunpack.c.l.b16 %v648
    %v688 = vunpack.c.l.b16 %v649
    %v689 = vunpack.c.l.b16 %v650
    %v690 = vunpack.c.l.b16 %v651
    %v691 = vpack.c.b16 %v676, %v675
    %v692 = vpack.c.b16 %v678, %v677
    %v693 = vpack.c.b16 %v680, %v679
    %v694 = vpack.c.b16 %v682, %v681
    %v695 = vpack.c.b16 %v684, %v683
    %v696 = vpack.c.b16 %v686, %v685
    %v697 = vpack.c.b16 %v688, %v687
    %v698 = vpack.c.b16 %v690, %v689
    %707 = vmatprep.subr.bf16.mxu0 0
    %708 = vmatpush1.bf16.msra.mxu0 %v691
    %709 = vmatprep.subr.bf16.mxu0 0
    %710 = vmatpush1.bf16.msra.mxu0 %v692
    %711 = vmatprep.subr.bf16.mxu0 0
    %712 = vmatpush1.bf16.msra.mxu0 %v693
    %713 = vmatprep.subr.bf16.mxu0 0
    %714 = vmatpush1.bf16.msra.mxu0 %v694
    %715 = vmatprep.subr.bf16.mxu0 0
    %716 = vmatpush1.bf16.msra.mxu0 %v695
    %717 = vmatprep.subr.bf16.mxu0 0
    %718 = vmatpush1.bf16.msra.mxu0 %v696
    %719 = vmatprep.subr.bf16.mxu0 0
    %720 = vmatpush1.bf16.msra.mxu0 %v697
    %721 = vmatprep.subr.bf16.mxu0 0
    %722 = vmatpush1.bf16.msra.mxu0 %v698
    %723 = vmatprep.subr.bf16.mxu0 0
    %724 = vmatpush1.bf16.msra.mxu0 0
    %725 = vmatprep.subr.bf16.mxu0 0
    %726 = vmatpush1.bf16.msra.mxu0 0
    %727 = vmatprep.subr.bf16.mxu0 0
    %728 = vmatpush1.bf16.msra.mxu0 0
    %729 = vmatprep.subr.bf16.mxu0 0
    %730 = vmatpush1.bf16.msra.mxu0 0
    %731 = vmatprep.subr.bf16.mxu0 0
    %732 = vmatpush1.bf16.msra.mxu0 0
    %733 = vmatprep.subr.bf16.mxu0 0
    %734 = vmatpush1.bf16.msra.mxu0 0
    %735 = vmatprep.subr.bf16.mxu0 0
    %736 = vmatpush1.bf16.msra.mxu0 0
    %737 = vmatprep.subr.bf16.mxu0 0
    %738 = vmatpush1.bf16.msra.mxu0 0
    %739 = vmatprep.mubr.bf16.mxu0 0
    %740 = vmatmul.mubr.bf16.gmra.mrb[0].mxu0 %v654
    %v741 = vpop.f32.mrb[0].mxu0
    %v742 = vadd.f32 %v658, %v741
    %v743 = vpop.f32.mrb[0].mxu0
    %v744 = vpop.f32.mrb[0].mxu0
    %v745 = vpop.f32.mrb[0].mxu0
    %746 = vdwg.mxu0
    %v747 = vmax.f32 %v742, 0.0
    %v748 = vrot.slane %v747, 4
    %v749 = vadd.f32 %v747, %v748
    %v750 = vrot.slane %v749, 2
    %v751 = vadd.f32 %v749, %v750
    %v752 = vrot.slane %v751, 1
    %v753 = vadd.f32 %v751, %v752
    %v754 = vmul.f32 %v747, %v747
    %v755 = vrot.slane %v754, 4
    %v756 = vadd.f32 %v754, %v755
    %v757 = vrot.slane %v756, 2
    %v758 = vadd.f32 %v756, %v757
    %v759 = vrot.slane %v758, 1
    %v760 = vadd.f32 %v758, %v759
    %v761 = vmul.f32 %v753, 0.125
    %v762 = vmul.f32 %v760, 0.125
    %v763 = vmul.f32 %v761, %v761
    %v764 = vsub.f32 %v762, %v763
    %v765 = vadd.f32 %v764, 1e-05
    %v766 = vrsqrt.pop %v765
    %v767 = vmul.f32 %v766, %v653
    %v768 = vmul.f32 %v761, %v767
    %v770 = vrot.slane %v768, 7
    %v772 = vsub.f32 %v653, %v770
    %v773 = vlaneseq
    %v774 = vshrl.u32 %v773, 7
    %v775 = vsub.s32 1, %v774
    %v776 = vrot.slane %v767, %v775
    %v777 = vmul.f32 %v747, %v776
    %v778 = vlaneseq
    %v779 = vshrl.u32 %v778, 7
    %v780 = vsub.s32 2, %v779
    %v781 = vrot.slane %v772, %v780
    %v782 = vadd.f32 %v777, %v781
    %s783 = scalar_lea.vmem [#allocation2], 320
    %v784 = vld [vmem:[%s783] sm:$0xf]
    %v785 = vld [vmem:[%s783 + $0x4] sm:$0xf]
    %v786 = vld [vmem:[%s783 + $0x8] sm:$0xf]
    %v787 = vld [vmem:[%s783 + $0xc] sm:$0xf]
    %v788 = vld [vmem:[%s783 + $0x10] sm:$0xf]
    %v789 = vld [vmem:[%s783 + $0x14] sm:$0xf]
    %v790 = vld [vmem:[%s783 + $0x18] sm:$0xf]
    %v791 = vld [vmem:[%s783 + $0x1c] sm:$0xf]
    %v792 = vld [vmem:[%s783 + $0x20] sm:$0xf]
    %v793 = vld [vmem:[%s783 + $0x24] sm:$0xf]
    %v794 = vld [vmem:[%s783 + $0x28] sm:$0xf]
    %v795 = vld [vmem:[%s783 + $0x2c] sm:$0xf]
    %v796 = vld [vmem:[%s783 + $0x30] sm:$0xf]
    %v797 = vld [vmem:[%s783 + $0x34] sm:$0xf]
    %v798 = vld [vmem:[%s783 + $0x38] sm:$0xf]
    %v799 = vld [vmem:[%s783 + $0x3c] sm:$0xf]
    %s800 = scalar_lea.vmem [#allocation5], 20
    %v801 = vld [vmem:[%s800] sm:$0x7]
    %v802 = vpack.c.bf16 %v782, %v782
    %v803 = vlaneseq
    %v804 = vshrl.u32 %v803, 7
    %v805 = vsub.s32 0, %v804
    %v806 = vrot.slane %v801, %v805
    %v823 = vunpack.c.l.b16 %v784
    %v824 = vunpack.c.l.b16 %v785
    %v825 = vunpack.c.l.b16 %v786
    %v826 = vunpack.c.l.b16 %v787
    %v827 = vunpack.c.l.b16 %v788
    %v828 = vunpack.c.l.b16 %v789
    %v829 = vunpack.c.l.b16 %v790
    %v830 = vunpack.c.l.b16 %v791
    %v831 = vunpack.c.l.b16 %v792
    %v832 = vunpack.c.l.b16 %v793
    %v833 = vunpack.c.l.b16 %v794
    %v834 = vunpack.c.l.b16 %v795
    %v835 = vunpack.c.l.b16 %v796
    %v836 = vunpack.c.l.b16 %v797
    %v837 = vunpack.c.l.b16 %v798
    %v838 = vunpack.c.l.b16 %v799
    %v839 = vpack.c.b16 %v824, %v823
    %v840 = vpack.c.b16 %v826, %v825
    %v841 = vpack.c.b16 %v828, %v827
    %v842 = vpack.c.b16 %v830, %v829
    %v843 = vpack.c.b16 %v832, %v831
    %v844 = vpack.c.b16 %v834, %v833
    %v845 = vpack.c.b16 %v836, %v835
    %v846 = vpack.c.b16 %v838, %v837
    %855 = vmatprep.subr.bf16.mxu0 0
    %856 = vmatpush1.bf16.msra.mxu0 %v839
    %857 = vmatprep.subr.bf16.mxu0 0
    %858 = vmatpush1.bf16.msra.mxu0 %v840
    %859 = vmatprep.subr.bf16.mxu0 0
    %860 = vmatpush1.bf16.msra.mxu0 %v841
    %861 = vmatprep.subr.bf16.mxu0 0
    %862 = vmatpush1.bf16.msra.mxu0 %v842
    %863 = vmatprep.subr.bf16.mxu0 0
    %864 = vmatpush1.bf16.msra.mxu0 %v843
    %865 = vmatprep.subr.bf16.mxu0 0
    %866 = vmatpush1.bf16.msra.mxu0 %v844
    %867 = vmatprep.subr.bf16.mxu0 0
    %868 = vmatpush1.bf16.msra.mxu0 %v845
    %869 = vmatprep.subr.bf16.mxu0 0
    %870 = vmatpush1.bf16.msra.mxu0 %v846
    %871 = vmatprep.subr.bf16.mxu0 0
    %872 = vmatpush1.bf16.msra.mxu0 0
    %873 = vmatprep.subr.bf16.mxu0 0
    %874 = vmatpush1.bf16.msra.mxu0 0
    %875 = vmatprep.subr.bf16.mxu0 0
    %876 = vmatpush1.bf16.msra.mxu0 0
    %877 = vmatprep.subr.bf16.mxu0 0
    %878 = vmatpush1.bf16.msra.mxu0 0
    %879 = vmatprep.subr.bf16.mxu0 0
    %880 = vmatpush1.bf16.msra.mxu0 0
    %881 = vmatprep.subr.bf16.mxu0 0
    %882 = vmatpush1.bf16.msra.mxu0 0
    %883 = vmatprep.subr.bf16.mxu0 0
    %884 = vmatpush1.bf16.msra.mxu0 0
    %885 = vmatprep.subr.bf16.mxu0 0
    %886 = vmatpush1.bf16.msra.mxu0 0
    %887 = vmatprep.mubr.bf16.mxu0 0
    %888 = vmatmul.mubr.bf16.gmra.mrb[0].mxu0 %v802
    %v889 = vpop.f32.mrb[0].mxu0
    %v890 = vadd.f32 %v806, %v889
    %v891 = vpop.f32.mrb[0].mxu0
    %v892 = vpop.f32.mrb[0].mxu0
    %v893 = vpop.f32.mrb[0].mxu0
    %894 = vdwg.mxu0
    %s895 = scalar_lea.vmem [#allocation2], 384
    %v896 = vld [vmem:[%s895] sm:$0xf]
    %v897 = vld [vmem:[%s895 + $0x4] sm:$0xf]
    %v898 = vld [vmem:[%s895 + $0x8] sm:$0xf]
    %v899 = vld [vmem:[%s895 + $0xc] sm:$0xf]
    %v900 = vld [vmem:[%s895 + $0x10] sm:$0xf]
    %v901 = vld [vmem:[%s895 + $0x14] sm:$0xf]
    %v902 = vld [vmem:[%s895 + $0x18] sm:$0xf]
    %v903 = vld [vmem:[%s895 + $0x1c] sm:$0xf]
    %v904 = vld [vmem:[%s895 + $0x20] sm:$0xf]
    %v905 = vld [vmem:[%s895 + $0x24] sm:$0xf]
    %v906 = vld [vmem:[%s895 + $0x28] sm:$0xf]
    %v907 = vld [vmem:[%s895 + $0x2c] sm:$0xf]
    %v908 = vld [vmem:[%s895 + $0x30] sm:$0xf]
    %v909 = vld [vmem:[%s895 + $0x34] sm:$0xf]
    %v910 = vld [vmem:[%s895 + $0x38] sm:$0xf]
    %v911 = vld [vmem:[%s895 + $0x3c] sm:$0xf]
    %s912 = scalar_lea.vmem [#allocation5], 24
    %v913 = vld [vmem:[%s912] sm:$0x7]
    %v914 = vpack.c.bf16 %v890, %v890
    %v915 = vlaneseq
    %v916 = vshrl.u32 %v915, 7
    %v917 = vsub.s32 0, %v916
    %v918 = vrot.slane %v913, %v917
    %v935 = vunpack.c.l.b16 %v896
    %v936 = vunpack.c.l.b16 %v897
    %v937 = vunpack.c.l.b16 %v898
    %v938 = vunpack.c.l.b16 %v899
    %v939 = vunpack.c.l.b16 %v900
    %v940 = vunpack.c.l.b16 %v901
    %v941 = vunpack.c.l.b16 %v902
    %v942 = vunpack.c.l.b16 %v903
    %v943 = vunpack.c.l.b16 %v904
    %v944 = vunpack.c.l.b16 %v905
    %v945 = vunpack.c.l.b16 %v906
    %v946 = vunpack.c.l.b16 %v907
    %v947 = vunpack.c.l.b16 %v908
    %v948 = vunpack.c.l.b16 %v909
    %v949 = vunpack.c.l.b16 %v910
    %v950 = vunpack.c.l.b16 %v911
    %v951 = vpack.c.b16 %v936, %v935
    %v952 = vpack.c.b16 %v938, %v937
    %v953 = vpack.c.b16 %v940, %v939
    %v954 = vpack.c.b16 %v942, %v941
    %v955 = vpack.c.b16 %v944, %v943
    %v956 = vpack.c.b16 %v946, %v945
    %v957 = vpack.c.b16 %v948, %v947
    %v958 = vpack.c.b16 %v950, %v949
    %967 = vmatprep.subr.bf16.mxu0 0
    %968 = vmatpush1.bf16.msra.mxu0 %v951
    %969 = vmatprep.subr.bf16.mxu0 0
    %970 = vmatpush1.bf16.msra.mxu0 %v952
    %971 = vmatprep.subr.bf16.mxu0 0
    %972 = vmatpush1.bf16.msra.mxu0 %v953
    %973 = vmatprep.subr.bf16.mxu0 0
    %974 = vmatpush1.bf16.msra.mxu0 %v954
    %975 = vmatprep.subr.bf16.mxu0 0
    %976 = vmatpush1.bf16.msra.mxu0 %v955
    %977 = vmatprep.subr.bf16.mxu0 0
    %978 = vmatpush1.bf16.msra.mxu0 %v956
    %979 = vmatprep.subr.bf16.mxu0 0
    %980 = vmatpush1.bf16.msra.mxu0 %v957
    %981 = vmatprep.subr.bf16.mxu0 0
    %982 = vmatpush1.bf16.msra.mxu0 %v958
    %983 = vmatprep.subr.bf16.mxu0 0
    %984 = vmatpush1.bf16.msra.mxu0 0
    %985 = vmatprep.subr.bf16.mxu0 0
    %986 = vmatpush1.bf16.msra.mxu0 0
    %987 = vmatprep.subr.bf16.mxu0 0
    %988 = vmatpush1.bf16.msra.mxu0 0
    %989 = vmatprep.subr.bf16.mxu0 0
    %990 = vmatpush1.bf16.msra.mxu0 0
    %991 = vmatprep.subr.bf16.mxu0 0
    %992 = vmatpush1.bf16.msra.mxu0 0
    %993 = vmatprep.subr.bf16.mxu0 0
    %994 = vmatpush1.bf16.msra.mxu0 0
    %995 = vmatprep.subr.bf16.mxu0 0
    %996 = vmatpush1.bf16.msra.mxu0 0
    %997 = vmatprep.subr.bf16.mxu0 0
    %998 = vmatpush1.bf16.msra.mxu0 0
    %999 = vmatprep.mubr.bf16.mxu0 0
    %1000 = vmatmul.mubr.bf16.gmra.mrb[0].mxu0 %v914
    %v1001 = vpop.f32.mrb[0].mxu0
    %v1002 = vadd.f32 %v918, %v1001
    %v1003 = vpop.f32.mrb[0].mxu0
    %v1004 = vpop.f32.mrb[0].mxu0
    %v1005 = vpop.f32.mrb[0].mxu0
    %1006 = vdwg.mxu0
    %v1007 = vmax.f32 %v1002, 0.0
    %v1008 = vrot.slane %v1007, 4
    %v1009 = vadd.f32 %v1007, %v1008
    %v1010 = vrot.slane %v1009, 2
    %v1011 = vadd.f32 %v1009, %v1010
    %v1012 = vrot.slane %v1011, 1
    %v1013 = vadd.f32 %v1011, %v1012
    %v1014 = vmul.f32 %v1007, %v1007
    %v1015 = vrot.slane %v1014, 4
    %v1016 = vadd.f32 %v1014, %v1015
    %v1017 = vrot.slane %v1016, 2
    %v1018 = vadd.f32 %v1016, %v1017
    %v1019 = vrot.slane %v1018, 1
    %v1020 = vadd.f32 %v1018, %v1019
    %v1021 = vmul.f32 %v1013, 0.125
    %v1022 = vmul.f32 %v1020, 0.125
    %v1023 = vmul.f32 %v1021, %v1021
    %v1024 = vsub.f32 %v1022, %v1023
    %v1025 = vadd.f32 %v1024, 1e-05
    %v1026 = vrsqrt.pop %v1025
    %v1027 = vmul.f32 %v1026, %v913
    %v1028 = vmul.f32 %v1021, %v1027
    %v1030 = vrot.slane %v1028, 7
    %v1032 = vsub.f32 %v913, %v1030
    %v1033 = vlaneseq
    %v1034 = vshrl.u32 %v1033, 7
    %v1035 = vsub.s32 1, %v1034
    %v1036 = vrot.slane %v1027, %v1035
    %v1037 = vmul.f32 %v1007, %v1036
    %v1038 = vlaneseq
    %v1039 = vshrl.u32 %v1038, 7
    %v1040 = vsub.s32 2, %v1039
    %v1041 = vrot.slane %v1032, %v1040
    %v1042 = vadd.f32 %v1037, %v1041
    %s1043 = scalar_lea.vmem [#allocation2], 448
    %v1044 = vld [vmem:[%s1043] sm:$0xf]
    %v1045 = vld [vmem:[%s1043 + $0x4] sm:$0xf]
    %v1046 = vld [vmem:[%s1043 + $0x8] sm:$0xf]
    %v1047 = vld [vmem:[%s1043 + $0xc] sm:$0xf]
    %v1048 = vld [vmem:[%s1043 + $0x10] sm:$0xf]
    %v1049 = vld [vmem:[%s1043 + $0x14] sm:$0xf]
    %v1050 = vld [vmem:[%s1043 + $0x18] sm:$0xf]
    %v1051 = vld [vmem:[%s1043 + $0x1c] sm:$0xf]
    %v1052 = vld [vmem:[%s1043 + $0x20] sm:$0xf]
    %v1053 = vld [vmem:[%s1043 + $0x24] sm:$0xf]
    %v1054 = vld [vmem:[%s1043 + $0x28] sm:$0xf]
    %v1055 = vld [vmem:[%s1043 + $0x2c] sm:$0xf]
    %v1056 = vld [vmem:[%s1043 + $0x30] sm:$0xf]
    %v1057 = vld [vmem:[%s1043 + $0x34] sm:$0xf]
    %v1058 = vld [vmem:[%s1043 + $0x38] sm:$0xf]
    %v1059 = vld [vmem:[%s1043 + $0x3c] sm:$0xf]
    %s1060 = scalar_lea.vmem [#allocation5], 28
    %v1061 = vld [vmem:[%s1060] sm:$0x7]
    %v1062 = vpack.c.bf16 %v1042, %v1042
    %v1063 = vlaneseq
    %v1064 = vshrl.u32 %v1063, 7
    %v1065 = vsub.s32 0, %v1064
    %v1066 = vrot.slane %v1061, %v1065
    %v1083 = vunpack.c.l.b16 %v1044
    %v1084 = vunpack.c.l.b16 %v1045
    %v1085 = vunpack.c.l.b16 %v1046
    %v1086 = vunpack.c.l.b16 %v1047
    %v1087 = vunpack.c.l.b16 %v1048
    %v1088 = vunpack.c.l.b16 %v1049
    %v1089 = vunpack.c.l.b16 %v1050
    %v1090 = vunpack.c.l.b16 %v1051
    %v1091 = vunpack.c.l.b16 %v1052
    %v1092 = vunpack.c.l.b16 %v1053
    %v1093 = vunpack.c.l.b16 %v1054
    %v1094 = vunpack.c.l.b16 %v1055
    %v1095 = vunpack.c.l.b16 %v1056
    %v1096 = vunpack.c.l.b16 %v1057
    %v1097 = vunpack.c.l.b16 %v1058
    %v1098 = vunpack.c.l.b16 %v1059
    %v1099 = vpack.c.b16 %v1084, %v1083
    %v1100 = vpack.c.b16 %v1086, %v1085
    %v1101 = vpack.c.b16 %v1088, %v1087
    %v1102 = vpack.c.b16 %v1090, %v1089
    %v1103 = vpack.c.b16 %v1092, %v1091
    %v1104 = vpack.c.b16 %v1094, %v1093
    %v1105 = vpack.c.b16 %v1096, %v1095
    %v1106 = vpack.c.b16 %v1098, %v1097
    %1115 = vmatprep.subr.bf16.mxu0 0
    %1116 = vmatpush1.bf16.msra.mxu0 %v1099
    %1117 = vmatprep.subr.bf16.mxu0 0
    %1118 = vmatpush1.bf16.msra.mxu0 %v1100
    %1119 = vmatprep.subr.bf16.mxu0 0
    %1120 = vmatpush1.bf16.msra.mxu0 %v1101
    %1121 = vmatprep.subr.bf16.mxu0 0
    %1122 = vmatpush1.bf16.msra.mxu0 %v1102
    %1123 = vmatprep.subr.bf16.mxu0 0
    %1124 = vmatpush1.bf16.msra.mxu0 %v1103
    %1125 = vmatprep.subr.bf16.mxu0 0
    %1126 = vmatpush1.bf16.msra.mxu0 %v1104
    %1127 = vmatprep.subr.bf16.mxu0 0
    %1128 = vmatpush1.bf16.msra.mxu0 %v1105
    %1129 = vmatprep.subr.bf16.mxu0 0
    %1130 = vmatpush1.bf16.msra.mxu0 %v1106
    %1131 = vmatprep.subr.bf16.mxu0 0
    %1132 = vmatpush1.bf16.msra.mxu0 0
    %1133 = vmatprep.subr.bf16.mxu0 0
    %1134 = vmatpush1.bf16.msra.mxu0 0
    %1135 = vmatprep.subr.bf16.mxu0 0
    %1136 = vmatpush1.bf16.msra.mxu0 0
    %1137 = vmatprep.subr.bf16.mxu0 0
    %1138 = vmatpush1.bf16.msra.mxu0 0
    %1139 = vmatprep.subr.bf16.mxu0 0
    %1140 = vmatpush1.bf16.msra.mxu0 0
    %1141 = vmatprep.subr.bf16.mxu0 0
    %1142 = vmatpush1.bf16.msra.mxu0 0
    %1143 = vmatprep.subr.bf16.mxu0 0
    %1144 = vmatpush1.bf16.msra.mxu0 0
    %1145 = vmatprep.subr.bf16.mxu0 0
    %1146 = vmatpush1.bf16.msra.mxu0 0
    %1147 = vmatprep.mubr.bf16.mxu0 0
    %1148 = vmatmul.mubr.bf16.gmra.mrb[0].mxu0 %v1062
    %v1149 = vpop.f32.mrb[0].mxu0
    %v1150 = vadd.f32 %v1066, %v1149
    %v1151 = vpop.f32.mrb[0].mxu0
    %v1152 = vpop.f32.mrb[0].mxu0
    %v1153 = vpop.f32.mrb[0].mxu0
    %1154 = vdwg.mxu0
    %v1155 = vmax.f32 %v1150, 0.0
    %v1156 = vrot.slane %v1155, 4
    %v1157 = vadd.f32 %v1155, %v1156
    %v1158 = vrot.slane %v1157, 2
    %v1159 = vadd.f32 %v1157, %v1158
    %v1160 = vrot.slane %v1159, 1
    %v1161 = vadd.f32 %v1159, %v1160
    %v1162 = vmul.f32 %v1155, %v1155
    %v1163 = vrot.slane %v1162, 4
    %v1164 = vadd.f32 %v1162, %v1163
    %v1165 = vrot.slane %v1164, 2
    %v1166 = vadd.f32 %v1164, %v1165
    %v1167 = vrot.slane %v1166, 1
    %v1168 = vadd.f32 %v1166, %v1167
    %v1169 = vmul.f32 %v1161, 0.125
    %v1170 = vmul.f32 %v1168, 0.125
    %v1171 = vmul.f32 %v1169, %v1169
    %v1172 = vsub.f32 %v1170, %v1171
    %v1173 = vadd.f32 %v1172, 1e-05
    %v1174 = vrsqrt.pop %v1173
    %v1175 = vmul.f32 %v1174, %v1061
    %v1176 = vmul.f32 %v1169, %v1175
    %v1178 = vrot.slane %v1176, 7
    %v1180 = vsub.f32 %v1061, %v1178
    %v1181 = vlaneseq
    %v1182 = vshrl.u32 %v1181, 7
    %v1183 = vsub.s32 1, %v1182
    %v1184 = vrot.slane %v1175, %v1183
    %v1185 = vmul.f32 %v1155, %v1184
    %v1186 = vlaneseq
    %v1187 = vshrl.u32 %v1186, 7
    %v1188 = vsub.s32 2, %v1187
    %v1189 = vrot.slane %v1180, %v1188
    %v1190 = vadd.f32 %v1185, %v1189
    %s1191 = scalar_lea.vmem [#allocation2], 512
    %v1192 = vld [vmem:[%s1191] sm:$0xf]
    %v1193 = vld [vmem:[%s1191 + $0x4] sm:$0xf]
    %v1194 = vld [vmem:[%s1191 + $0x8] sm:$0xf]
    %v1195 = vld [vmem:[%s1191 + $0xc] sm:$0xf]
    %v1196 = vld [vmem:[%s1191 + $0x10] sm:$0xf]
    %v1197 = vld [vmem:[%s1191 + $0x14] sm:$0xf]
    %v1198 = vld [vmem:[%s1191 + $0x18] sm:$0xf]
    %v1199 = vld [vmem:[%s1191 + $0x1c] sm:$0xf]
    %v1200 = vld [vmem:[%s1191 + $0x20] sm:$0xf]
    %v1201 = vld [vmem:[%s1191 + $0x24] sm:$0xf]
    %v1202 = vld [vmem:[%s1191 + $0x28] sm:$0xf]
    %v1203 = vld [vmem:[%s1191 + $0x2c] sm:$0xf]
    %v1204 = vld [vmem:[%s1191 + $0x30] sm:$0xf]
    %v1205 = vld [vmem:[%s1191 + $0x34] sm:$0xf]
    %v1206 = vld [vmem:[%s1191 + $0x38] sm:$0xf]
    %v1207 = vld [vmem:[%s1191 + $0x3c] sm:$0xf]
    %s1208 = scalar_lea.vmem [#allocation5], 32
    %v1209 = vld [vmem:[%s1208] sm:$0x7]
    %v1210 = vpack.c.bf16 %v1190, %v1190
    %v1211 = vlaneseq
    %v1212 = vshrl.u32 %v1211, 7
    %v1213 = vsub.s32 0, %v1212
    %v1214 = vrot.slane %v1209, %v1213
    %v1231 = vunpack.c.l.b16 %v1192
    %v1232 = vunpack.c.l.b16 %v1193
    %v1233 = vunpack.c.l.b16 %v1194
    %v1234 = vunpack.c.l.b16 %v1195
    %v1235 = vunpack.c.l.b16 %v1196
    %v1236 = vunpack.c.l.b16 %v1197
    %v1237 = vunpack.c.l.b16 %v1198
    %v1238 = vunpack.c.l.b16 %v1199
    %v1239 = vunpack.c.l.b16 %v1200
    %v1240 = vunpack.c.l.b16 %v1201
    %v1241 = vunpack.c.l.b16 %v1202
    %v1242 = vunpack.c.l.b16 %v1203
    %v1243 = vunpack.c.l.b16 %v1204
    %v1244 = vunpack.c.l.b16 %v1205
    %v1245 = vunpack.c.l.b16 %v1206
    %v1246 = vunpack.c.l.b16 %v1207
    %v1247 = vpack.c.b16 %v1232, %v1231
    %v1248 = vpack.c.b16 %v1234, %v1233
    %v1249 = vpack.c.b16 %v1236, %v1235
    %v1250 = vpack.c.b16 %v1238, %v1237
    %v1251 = vpack.c.b16 %v1240, %v1239
    %v1252 = vpack.c.b16 %v1242, %v1241
    %v1253 = vpack.c.b16 %v1244, %v1243
    %v1254 = vpack.c.b16 %v1246, %v1245
    %1263 = vmatprep.subr.bf16.mxu0 0
    %1264 = vmatpush1.bf16.msra.mxu0 %v1247
    %1265 = vmatprep.subr.bf16.mxu0 0
    %1266 = vmatpush1.bf16.msra.mxu0 %v1248
    %1267 = vmatprep.subr.bf16.mxu0 0
    %1268 = vmatpush1.bf16.msra.mxu0 %v1249
    %1269 = vmatprep.subr.bf16.mxu0 0
    %1270 = vmatpush1.bf16.msra.mxu0 %v1250
    %1271 = vmatprep.subr.bf16.mxu0 0
    %1272 = vmatpush1.bf16.msra.mxu0 %v1251
    %1273 = vmatprep.subr.bf16.mxu0 0
    %1274 = vmatpush1.bf16.msra.mxu0 %v1252
    %1275 = vmatprep.subr.bf16.mxu0 0
    %1276 = vmatpush1.bf16.msra.mxu0 %v1253
    %1277 = vmatprep.subr.bf16.mxu0 0
    %1278 = vmatpush1.bf16.msra.mxu0 %v1254
    %1279 = vmatprep.subr.bf16.mxu0 0
    %1280 = vmatpush1.bf16.msra.mxu0 0
    %1281 = vmatprep.subr.bf16.mxu0 0
    %1282 = vmatpush1.bf16.msra.mxu0 0
    %1283 = vmatprep.subr.bf16.mxu0 0
    %1284 = vmatpush1.bf16.msra.mxu0 0
    %1285 = vmatprep.subr.bf16.mxu0 0
    %1286 = vmatpush1.bf16.msra.mxu0 0
    %1287 = vmatprep.subr.bf16.mxu0 0
    %1288 = vmatpush1.bf16.msra.mxu0 0
    %1289 = vmatprep.subr.bf16.mxu0 0
    %1290 = vmatpush1.bf16.msra.mxu0 0
    %1291 = vmatprep.subr.bf16.mxu0 0
    %1292 = vmatpush1.bf16.msra.mxu0 0
    %1293 = vmatprep.subr.bf16.mxu0 0
    %1294 = vmatpush1.bf16.msra.mxu0 0
    %1295 = vmatprep.mubr.bf16.mxu0 0
    %1296 = vmatmul.mubr.bf16.gmra.mrb[0].mxu0 %v1210
    %v1297 = vpop.f32.mrb[0].mxu0
    %v1298 = vadd.f32 %v1214, %v1297
    %v1299 = vpop.f32.mrb[0].mxu0
    %v1300 = vpop.f32.mrb[0].mxu0
    %v1301 = vpop.f32.mrb[0].mxu0
    %1302 = vdwg.mxu0
    %v1303 = vmax.f32 %v1298, 0.0
    %v1304 = vrot.slane %v1303, 4
    %v1305 = vadd.f32 %v1303, %v1304
    %v1306 = vrot.slane %v1305, 2
    %v1307 = vadd.f32 %v1305, %v1306
    %v1308 = vrot.slane %v1307, 1
    %v1309 = vadd.f32 %v1307, %v1308
    %v1310 = vmul.f32 %v1303, %v1303
    %v1311 = vrot.slane %v1310, 4
    %v1312 = vadd.f32 %v1310, %v1311
    %v1313 = vrot.slane %v1312, 2
    %v1314 = vadd.f32 %v1312, %v1313
    %v1315 = vrot.slane %v1314, 1
    %v1316 = vadd.f32 %v1314, %v1315
    %v1317 = vmul.f32 %v1309, 0.125
    %v1318 = vmul.f32 %v1316, 0.125
    %v1319 = vmul.f32 %v1317, %v1317
    %v1320 = vsub.f32 %v1318, %v1319
    %v1321 = vadd.f32 %v1320, 1e-05
    %v1322 = vrsqrt.pop %v1321
    %v1323 = vmul.f32 %v1322, %v1209
    %v1324 = vmul.f32 %v1317, %v1323
    %v1326 = vrot.slane %v1324, 7
    %v1328 = vsub.f32 %v1209, %v1326
    %v1329 = vlaneseq
    %v1330 = vshrl.u32 %v1329, 7
    %v1331 = vsub.s32 1, %v1330
    %v1332 = vrot.slane %v1323, %v1331
    %v1333 = vmul.f32 %v1303, %v1332
    %v1334 = vlaneseq
    %v1335 = vshrl.u32 %v1334, 7
    %v1336 = vsub.s32 2, %v1335
    %v1337 = vrot.slane %v1328, %v1336
    %v1338 = vadd.f32 %v1333, %v1337
    %s1339 = scalar_lea.vmem [#allocation2], 576
    %v1340 = vld [vmem:[%s1339] sm:$0xf]
    %v1341 = vld [vmem:[%s1339 + $0x4] sm:$0xf]
    %v1342 = vld [vmem:[%s1339 + $0x8] sm:$0xf]
    %v1343 = vld [vmem:[%s1339 + $0xc] sm:$0xf]
    %v1344 = vld [vmem:[%s1339 + $0x10] sm:$0xf]
    %v1345 = vld [vmem:[%s1339 + $0x14] sm:$0xf]
    %v1346 = vld [vmem:[%s1339 + $0x18] sm:$0xf]
    %v1347 = vld [vmem:[%s1339 + $0x1c] sm:$0xf]
    %v1348 = vld [vmem:[%s1339 + $0x20] sm:$0xf]
    %v1349 = vld [vmem:[%s1339 + $0x24] sm:$0xf]
    %v1350 = vld [vmem:[%s1339 + $0x28] sm:$0xf]
    %v1351 = vld [vmem:[%s1339 + $0x2c] sm:$0xf]
    %v1352 = vld [vmem:[%s1339 + $0x30] sm:$0xf]
    %v1353 = vld [vmem:[%s1339 + $0x34] sm:$0xf]
    %v1354 = vld [vmem:[%s1339 + $0x38] sm:$0xf]
    %v1355 = vld [vmem:[%s1339 + $0x3c] sm:$0xf]
    %s1356 = scalar_lea.vmem [#allocation5], 36
    %v1357 = vld [vmem:[%s1356] sm:$0x7]
    %v1358 = vpack.c.bf16 %v1338, %v1338
    %v1359 = vlaneseq
    %v1360 = vshrl.u32 %v1359, 7
    %v1361 = vsub.s32 0, %v1360
    %v1362 = vrot.slane %v1357, %v1361
    %v1379 = vunpack.c.l.b16 %v1340
    %v1380 = vunpack.c.l.b16 %v1341
    %v1381 = vunpack.c.l.b16 %v1342
    %v1382 = vunpack.c.l.b16 %v1343
    %v1383 = vunpack.c.l.b16 %v1344
    %v1384 = vunpack.c.l.b16 %v1345
    %v1385 = vunpack.c.l.b16 %v1346
    %v1386 = vunpack.c.l.b16 %v1347
    %v1387 = vunpack.c.l.b16 %v1348
    %v1388 = vunpack.c.l.b16 %v1349
    %v1389 = vunpack.c.l.b16 %v1350
    %v1390 = vunpack.c.l.b16 %v1351
    %v1391 = vunpack.c.l.b16 %v1352
    %v1392 = vunpack.c.l.b16 %v1353
    %v1393 = vunpack.c.l.b16 %v1354
    %v1394 = vunpack.c.l.b16 %v1355
    %v1395 = vpack.c.b16 %v1380, %v1379
    %v1396 = vpack.c.b16 %v1382, %v1381
    %v1397 = vpack.c.b16 %v1384, %v1383
    %v1398 = vpack.c.b16 %v1386, %v1385
    %v1399 = vpack.c.b16 %v1388, %v1387
    %v1400 = vpack.c.b16 %v1390, %v1389
    %v1401 = vpack.c.b16 %v1392, %v1391
    %v1402 = vpack.c.b16 %v1394, %v1393
    %1411 = vmatprep.subr.bf16.mxu0 0
    %1412 = vmatpush1.bf16.msra.mxu0 %v1395
    %1413 = vmatprep.subr.bf16.mxu0 0
    %1414 = vmatpush1.bf16.msra.mxu0 %v1396
    %1415 = vmatprep.subr.bf16.mxu0 0
    %1416 = vmatpush1.bf16.msra.mxu0 %v1397
    %1417 = vmatprep.subr.bf16.mxu0 0
    %1418 = vmatpush1.bf16.msra.mxu0 %v1398
    %1419 = vmatprep.subr.bf16.mxu0 0
    %1420 = vmatpush1.bf16.msra.mxu0 %v1399
    %1421 = vmatprep.subr.bf16.mxu0 0
    %1422 = vmatpush1.bf16.msra.mxu0 %v1400
    %1423 = vmatprep.subr.bf16.mxu0 0
    %1424 = vmatpush1.bf16.msra.mxu0 %v1401
    %1425 = vmatprep.subr.bf16.mxu0 0
    %1426 = vmatpush1.bf16.msra.mxu0 %v1402
    %1427 = vmatprep.subr.bf16.mxu0 0
    %1428 = vmatpush1.bf16.msra.mxu0 0
    %1429 = vmatprep.subr.bf16.mxu0 0
    %1430 = vmatpush1.bf16.msra.mxu0 0
    %1431 = vmatprep.subr.bf16.mxu0 0
    %1432 = vmatpush1.bf16.msra.mxu0 0
    %1433 = vmatprep.subr.bf16.mxu0 0
    %1434 = vmatpush1.bf16.msra.mxu0 0
    %1435 = vmatprep.subr.bf16.mxu0 0
    %1436 = vmatpush1.bf16.msra.mxu0 0
    %1437 = vmatprep.subr.bf16.mxu0 0
    %1438 = vmatpush1.bf16.msra.mxu0 0
    %1439 = vmatprep.subr.bf16.mxu0 0
    %1440 = vmatpush1.bf16.msra.mxu0 0
    %1441 = vmatprep.subr.bf16.mxu0 0
    %1442 = vmatpush1.bf16.msra.mxu0 0
    %1443 = vmatprep.mubr.bf16.mxu0 0
    %1444 = vmatmul.mubr.bf16.gmra.mrb[0].mxu0 %v1358
    %v1445 = vpop.f32.mrb[0].mxu0
    %v1446 = vadd.f32 %v1362, %v1445
    %v1447 = vpop.f32.mrb[0].mxu0
    %v1448 = vpop.f32.mrb[0].mxu0
    %v1449 = vpop.f32.mrb[0].mxu0
    %1450 = vdwg.mxu0
    %v1451 = vmax.f32 %v1446, 0.0
    %v1452 = vrot.slane %v1451, 4
    %v1453 = vadd.f32 %v1451, %v1452
    %v1454 = vrot.slane %v1453, 2
    %v1455 = vadd.f32 %v1453, %v1454
    %v1456 = vrot.slane %v1455, 1
    %v1457 = vadd.f32 %v1455, %v1456
    %v1458 = vmul.f32 %v1451, %v1451
    %v1459 = vrot.slane %v1458, 4
    %v1460 = vadd.f32 %v1458, %v1459
    %v1461 = vrot.slane %v1460, 2
    %v1462 = vadd.f32 %v1460, %v1461
    %v1463 = vrot.slane %v1462, 1
    %v1464 = vadd.f32 %v1462, %v1463
    %v1465 = vmul.f32 %v1457, 0.125
    %v1466 = vmul.f32 %v1464, 0.125
    %v1467 = vmul.f32 %v1465, %v1465
    %v1468 = vsub.f32 %v1466, %v1467
    %v1469 = vadd.f32 %v1468, 1e-05
    %v1470 = vrsqrt.pop %v1469
    %v1471 = vmul.f32 %v1470, %v1357
    %v1472 = vmul.f32 %v1465, %v1471
    %v1474 = vrot.slane %v1472, 7
    %v1476 = vsub.f32 %v1357, %v1474
    %v1477 = vlaneseq
    %v1478 = vshrl.u32 %v1477, 7
    %v1479 = vsub.s32 1, %v1478
    %v1480 = vrot.slane %v1471, %v1479
    %v1481 = vmul.f32 %v1451, %v1480
    %v1482 = vlaneseq
    %v1483 = vshrl.u32 %v1482, 7
    %v1484 = vsub.s32 2, %v1483
    %v1485 = vrot.slane %v1476, %v1484
    %v1486 = vadd.f32 %v1481, %v1485
    %s1487 = scalar_lea.vmem [#allocation2], 640
    %v1488 = vld [vmem:[%s1487] sm:$0xf]
    %v1489 = vld [vmem:[%s1487 + $0x4] sm:$0xf]
    %v1490 = vld [vmem:[%s1487 + $0x8] sm:$0xf]
    %v1491 = vld [vmem:[%s1487 + $0xc] sm:$0xf]
    %v1492 = vld [vmem:[%s1487 + $0x10] sm:$0xf]
    %v1493 = vld [vmem:[%s1487 + $0x14] sm:$0xf]
    %v1494 = vld [vmem:[%s1487 + $0x18] sm:$0xf]
    %v1495 = vld [vmem:[%s1487 + $0x1c] sm:$0xf]
    %v1496 = vld [vmem:[%s1487 + $0x20] sm:$0xf]
    %v1497 = vld [vmem:[%s1487 + $0x24] sm:$0xf]
    %v1498 = vld [vmem:[%s1487 + $0x28] sm:$0xf]
    %v1499 = vld [vmem:[%s1487 + $0x2c] sm:$0xf]
    %v1500 = vld [vmem:[%s1487 + $0x30] sm:$0xf]
    %v1501 = vld [vmem:[%s1487 + $0x34] sm:$0xf]
    %v1502 = vld [vmem:[%s1487 + $0x38] sm:$0xf]
    %v1503 = vld [vmem:[%s1487 + $0x3c] sm:$0xf]
    %s1504 = scalar_lea.vmem [#allocation5], 40
    %v1505 = vld [vmem:[%s1504] sm:$0x7]
    %v1506 = vpack.c.bf16 %v1486, %v1486
    %v1507 = vlaneseq
    %v1508 = vshrl.u32 %v1507, 7
    %v1509 = vsub.s32 0, %v1508
    %v1510 = vrot.slane %v1505, %v1509
    %v1527 = vunpack.c.l.b16 %v1488
    %v1528 = vunpack.c.l.b16 %v1489
    %v1529 = vunpack.c.l.b16 %v1490
    %v1530 = vunpack.c.l.b16 %v1491
    %v1531 = vunpack.c.l.b16 %v1492
    %v1532 = vunpack.c.l.b16 %v1493
    %v1533 = vunpack.c.l.b16 %v1494
    %v1534 = vunpack.c.l.b16 %v1495
    %v1535 = vunpack.c.l.b16 %v1496
    %v1536 = vunpack.c.l.b16 %v1497
    %v1537 = vunpack.c.l.b16 %v1498
    %v1538 = vunpack.c.l.b16 %v1499
    %v1539 = vunpack.c.l.b16 %v1500
    %v1540 = vunpack.c.l.b16 %v1501
    %v1541 = vunpack.c.l.b16 %v1502
    %v1542 = vunpack.c.l.b16 %v1503
    %v1543 = vpack.c.b16 %v1528, %v1527
    %v1544 = vpack.c.b16 %v1530, %v1529
    %v1545 = vpack.c.b16 %v1532, %v1531
    %v1546 = vpack.c.b16 %v1534, %v1533
    %v1547 = vpack.c.b16 %v1536, %v1535
    %v1548 = vpack.c.b16 %v1538, %v1537
    %v1549 = vpack.c.b16 %v1540, %v1539
    %v1550 = vpack.c.b16 %v1542, %v1541
    %1559 = vmatprep.subr.bf16.mxu0 0
    %1560 = vmatpush1.bf16.msra.mxu0 %v1543
    %1561 = vmatprep.subr.bf16.mxu0 0
    %1562 = vmatpush1.bf16.msra.mxu0 %v1544
    %1563 = vmatprep.subr.bf16.mxu0 0
    %1564 = vmatpush1.bf16.msra.mxu0 %v1545
    %1565 = vmatprep.subr.bf16.mxu0 0
    %1566 = vmatpush1.bf16.msra.mxu0 %v1546
    %1567 = vmatprep.subr.bf16.mxu0 0
    %1568 = vmatpush1.bf16.msra.mxu0 %v1547
    %1569 = vmatprep.subr.bf16.mxu0 0
    %1570 = vmatpush1.bf16.msra.mxu0 %v1548
    %1571 = vmatprep.subr.bf16.mxu0 0
    %1572 = vmatpush1.bf16.msra.mxu0 %v1549
    %1573 = vmatprep.subr.bf16.mxu0 0
    %1574 = vmatpush1.bf16.msra.mxu0 %v1550
    %1575 = vmatprep.subr.bf16.mxu0 0
    %1576 = vmatpush1.bf16.msra.mxu0 0
    %1577 = vmatprep.subr.bf16.mxu0 0
    %1578 = vmatpush1.bf16.msra.mxu0 0
    %1579 = vmatprep.subr.bf16.mxu0 0
    %1580 = vmatpush1.bf16.msra.mxu0 0
    %1581 = vmatprep.subr.bf16.mxu0 0
    %1582 = vmatpush1.bf16.msra.mxu0 0
    %1583 = vmatprep.subr.bf16.mxu0 0
    %1584 = vmatpush1.bf16.msra.mxu0 0
    %1585 = vmatprep.subr.bf16.mxu0 0
    %1586 = vmatpush1.bf16.msra.mxu0 0
    %1587 = vmatprep.subr.bf16.mxu0 0
    %1588 = vmatpush1.bf16.msra.mxu0 0
    %1589 = vmatprep.subr.bf16.mxu0 0
    %1590 = vmatpush1.bf16.msra.mxu0 0
    %1591 = vmatprep.mubr.bf16.mxu0 0
    %1592 = vmatmul.mubr.bf16.gmra.mrb[0].mxu0 %v1506
    %v1593 = vpop.f32.mrb[0].mxu0
    %v1594 = vadd.f32 %v1510, %v1593
    %v1595 = vpop.f32.mrb[0].mxu0
    %v1596 = vpop.f32.mrb[0].mxu0
    %v1597 = vpop.f32.mrb[0].mxu0
    %1598 = vdwg.mxu0
    %v1599 = vmax.f32 %v1594, 0.0
    %v1600 = vrot.slane %v1599, 4
    %v1601 = vadd.f32 %v1599, %v1600
    %v1602 = vrot.slane %v1601, 2
    %v1603 = vadd.f32 %v1601, %v1602
    %v1604 = vrot.slane %v1603, 1
    %v1605 = vadd.f32 %v1603, %v1604
    %v1606 = vmul.f32 %v1599, %v1599
    %v1607 = vrot.slane %v1606, 4
    %v1608 = vadd.f32 %v1606, %v1607
    %v1609 = vrot.slane %v1608, 2
    %v1610 = vadd.f32 %v1608, %v1609
    %v1611 = vrot.slane %v1610, 1
    %v1612 = vadd.f32 %v1610, %v1611
    %v1613 = vmul.f32 %v1605, 0.125
    %v1614 = vmul.f32 %v1612, 0.125
    %v1615 = vmul.f32 %v1613, %v1613
    %v1616 = vsub.f32 %v1614, %v1615
    %v1617 = vadd.f32 %v1616, 1e-05
    %v1618 = vrsqrt.pop %v1617
    %v1619 = vmul.f32 %v1618, %v1505
    %v1620 = vmul.f32 %v1613, %v1619
    %v1622 = vrot.slane %v1620, 7
    %v1624 = vsub.f32 %v1505, %v1622
    %v1625 = vlaneseq
    %v1626 = vshrl.u32 %v1625, 7
    %v1627 = vsub.s32 1, %v1626
    %v1628 = vrot.slane %v1619, %v1627
    %v1629 = vmul.f32 %v1599, %v1628
    %v1630 = vlaneseq
    %v1631 = vshrl.u32 %v1630, 7
    %v1632 = vsub.s32 2, %v1631
    %v1633 = vrot.slane %v1624, %v1632
    %v1634 = vadd.f32 %v1629, %v1633
    %s1635 = scalar_lea.vmem [#allocation2], 704
    %v1636 = vld [vmem:[%s1635] sm:$0xf]
    %v1637 = vld [vmem:[%s1635 + $0x4] sm:$0xf]
    %v1638 = vld [vmem:[%s1635 + $0x8] sm:$0xf]
    %v1639 = vld [vmem:[%s1635 + $0xc] sm:$0xf]
    %v1640 = vld [vmem:[%s1635 + $0x10] sm:$0xf]
    %v1641 = vld [vmem:[%s1635 + $0x14] sm:$0xf]
    %v1642 = vld [vmem:[%s1635 + $0x18] sm:$0xf]
    %v1643 = vld [vmem:[%s1635 + $0x1c] sm:$0xf]
    %v1644 = vld [vmem:[%s1635 + $0x20] sm:$0xf]
    %v1645 = vld [vmem:[%s1635 + $0x24] sm:$0xf]
    %v1646 = vld [vmem:[%s1635 + $0x28] sm:$0xf]
    %v1647 = vld [vmem:[%s1635 + $0x2c] sm:$0xf]
    %v1648 = vld [vmem:[%s1635 + $0x30] sm:$0xf]
    %v1649 = vld [vmem:[%s1635 + $0x34] sm:$0xf]
    %v1650 = vld [vmem:[%s1635 + $0x38] sm:$0xf]
    %v1651 = vld [vmem:[%s1635 + $0x3c] sm:$0xf]
    %s1652 = scalar_lea.vmem [#allocation5], 44
    %v1653 = vld [vmem:[%s1652] sm:$0x7]
    %v1654 = vpack.c.bf16 %v1634, %v1634
    %v1655 = vlaneseq
    %v1656 = vshrl.u32 %v1655, 7
    %v1657 = vsub.s32 0, %v1656
    %v1658 = vrot.slane %v1653, %v1657
    %v1675 = vunpack.c.l.b16 %v1636
    %v1676 = vunpack.c.l.b16 %v1637
    %v1677 = vunpack.c.l.b16 %v1638
    %v1678 = vunpack.c.l.b16 %v1639
    %v1679 = vunpack.c.l.b16 %v1640
    %v1680 = vunpack.c.l.b16 %v1641
    %v1681 = vunpack.c.l.b16 %v1642
    %v1682 = vunpack.c.l.b16 %v1643
    %v1683 = vunpack.c.l.b16 %v1644
    %v1684 = vunpack.c.l.b16 %v1645
    %v1685 = vunpack.c.l.b16 %v1646
    %v1686 = vunpack.c.l.b16 %v1647
    %v1687 = vunpack.c.l.b16 %v1648
    %v1688 = vunpack.c.l.b16 %v1649
    %v1689 = vunpack.c.l.b16 %v1650
    %v1690 = vunpack.c.l.b16 %v1651
    %v1691 = vpack.c.b16 %v1676, %v1675
    %v1692 = vpack.c.b16 %v1678, %v1677
    %v1693 = vpack.c.b16 %v1680, %v1679
    %v1694 = vpack.c.b16 %v1682, %v1681
    %v1695 = vpack.c.b16 %v1684, %v1683
    %v1696 = vpack.c.b16 %v1686, %v1685
    %v1697 = vpack.c.b16 %v1688, %v1687
    %v1698 = vpack.c.b16 %v1690, %v1689
    %1707 = vmatprep.subr.bf16.mxu0 0
    %1708 = vmatpush1.bf16.msra.mxu0 %v1691
    %1709 = vmatprep.subr.bf16.mxu0 0
    %1710 = vmatpush1.bf16.msra.mxu0 %v1692
    %1711 = vmatprep.subr.bf16.mxu0 0
    %1712 = vmatpush1.bf16.msra.mxu0 %v1693
    %1713 = vmatprep.subr.bf16.mxu0 0
    %1714 = vmatpush1.bf16.msra.mxu0 %v1694
    %1715 = vmatprep.subr.bf16.mxu0 0
    %1716 = vmatpush1.bf16.msra.mxu0 %v1695
    %1717 = vmatprep.subr.bf16.mxu0 0
    %1718 = vmatpush1.bf16.msra.mxu0 %v1696
    %1719 = vmatprep.subr.bf16.mxu0 0
    %1720 = vmatpush1.bf16.msra.mxu0 %v1697
    %1721 = vmatprep.subr.bf16.mxu0 0
    %1722 = vmatpush1.bf16.msra.mxu0 %v1698
    %1723 = vmatprep.subr.bf16.mxu0 0
    %1724 = vmatpush1.bf16.msra.mxu0 0
    %1725 = vmatprep.subr.bf16.mxu0 0
    %1726 = vmatpush1.bf16.msra.mxu0 0
    %1727 = vmatprep.subr.bf16.mxu0 0
    %1728 = vmatpush1.bf16.msra.mxu0 0
    %1729 = vmatprep.subr.bf16.mxu0 0
    %1730 = vmatpush1.bf16.msra.mxu0 0
    %1731 = vmatprep.subr.bf16.mxu0 0
    %1732 = vmatpush1.bf16.msra.mxu0 0
    %1733 = vmatprep.subr.bf16.mxu0 0
    %1734 = vmatpush1.bf16.msra.mxu0 0
    %1735 = vmatprep.subr.bf16.mxu0 0
    %1736 = vmatpush1.bf16.msra.mxu0 0
    %1737 = vmatprep.subr.bf16.mxu0 0
    %1738 = vmatpush1.bf16.msra.mxu0 0
    %1739 = vmatprep.mubr.bf16.mxu0 0
    %1740 = vmatmul.mubr.bf16.gmra.mrb[0].mxu0 %v1654
    %v1741 = vpop.f32.mrb[0].mxu0
    %v1742 = vadd.f32 %v1658, %v1741
    %v1743 = vpop.f32.mrb[0].mxu0
    %v1744 = vpop.f32.mrb[0].mxu0
    %v1745 = vpop.f32.mrb[0].mxu0
    %1746 = vdwg.mxu0
    %1747 = vst [vmem:[#allocation7] sm:$0xff] %v1742
    // Predicated region
    $region22: #{autoencoder_forward.1} parent=1 // pred_check
      _
    $region23: #{autoencoder_forward.1} parent=1 // pred_check_branch
      %1749 = sbr.rel (0) target = $region25
    $region24: #{autoencoder_forward.1} parent=1 // pred_region
      %s1751 = ssub.s32 128, 128
      %1752 = vsyncadd [#allocation4], %s1751
      %s1754 = sshll.u32 [#allocation7], 4
      %s1755 = int_to_ptr.vmem [resolvable:$true] %s1754
      %1757 = dma.vmem_to_hbm [thread:$0]  %s1755, 128, %s3, [#allocation4]
    $region25: #{autoencoder_forward.1} parent=1 // pred_fallthru
      _
    // Predicated region
    $region26: #{autoencoder_forward.1} parent=1 // pred_check
      _
    $region27: #{autoencoder_forward.1} parent=1 // pred_check_branch
      %1759 = sbr.rel (0) target = $region29
    $region28: #{autoencoder_forward.1} parent=1 // pred_region
      %1760 = dma.done [#allocation4], 128
    $region29: #{autoencoder_forward.1} parent=1 // pred_fallthru
      _
    %1761 = vsyncpa [#allocation3], 1
    %1762 = vsyncpa [#allocation6], 1
    %1763 = vsyncpa [#allocation4], 1

</llo_original>
